<compile_context>
chip_gen: v5e
topology: v5e:2x2
jax: 0.10.0
libtpu: 0.0.40
codegen_flags: <defaults>
</compile_context>

<pallas_src>
import jax
import jax.numpy as jnp
from jax.experimental import pallas as pl
from jax.experimental.pallas import tpu as pltpu

# ---------------- model hyper-parameters (small, synthetic) ----------------
VOCAB = 128          # lane-aligned synthetic vocab
BATCH = 2
SEQ = 8
HIDDEN = 128         # lane-aligned hidden size
NUM_CLASSES = 1

# Per-dot precision (replaces the previous global jax_default_matmul_precision
# mutation).  Kept at HIGHEST so the kernel matches the pure-JAX reference to
# 1e-4 at these tiny magnitudes; relax to DEFAULT/bf16 on v6e/v7x at scale.
DOT_PREC = jax.lax.Precision.HIGHEST


# ------------------------------- kernel ------------------------------------
def dpic_kernel(ids_ref, p_ref, e_tab_ref, w0_ref, w1_ref, b_ref, out_ref):
    """Fused: one-hot gather of the (encoder-folded) table -> tanh ->
    pooling matmul (mask & 1/len pre-folded) -> split classifier."""
    T2 = ids_ref.shape[0]          # 2 * TB * S  (ori tokens, then gen tokens)
    T = T2 // 2                    # tokens per branch in this tile
    V, H = e_tab_ref.shape

    # ---- fused gather + encoder: tanh(one-hot(ids) @ (tok_emb @ W_enc + b)) --
    ids = ids_ref[...]                                              # [2T, 1] i32
    vocab_iota = jax.lax.broadcasted_iota(jnp.int32, (T2, V), 1)
    onehot = (vocab_iota == ids).astype(jnp.float32)                # [2T, V]
    h = jnp.tanh(jnp.dot(onehot, e_tab_ref[...],
                         preferred_element_type=jnp.float32,
                         precision=DOT_PREC))                       # [2T, H]

    # ---- masked mean pooling: single MXU matmul against precomputed P -------
    # P rows are already zero-padded to a multiple of 8 and carry mask * 1/len.
    p = p_ref[0]                                                    # [TBP, T]
    e_ori = jnp.dot(p, h[:T], preferred_element_type=jnp.float32,
                    precision=DOT_PREC)                             # [TBP, H]
    e_gen = jnp.dot(p, h[T:], preferred_element_type=jnp.float32,
                    precision=DOT_PREC)                             # [TBP, H]

    # ---- classifier: split weight == concat([e_ori, e_gen]) @ W (no concat) --
    logits = (jnp.dot(e_ori, w0_ref[...], preferred_element_type=jnp.float32,
                      precision=DOT_PREC)
              + jnp.dot(e_gen, w1_ref[...], preferred_element_type=jnp.float32,
                        precision=DOT_PREC)
              + b_ref[...])                                         # [TBP, CPAD]
    out_ref[...] = logits.astype(out_ref.dtype)


# ------------------------------ wrapper -------------------------------------
def dpic_forward(params, input_ids_ori, input_ids_gen, attention_mask):
    B, S = input_ids_ori.shape
    V, H = params["tok_emb"].shape
    C = params["w_cls"].shape[1]
    CPAD = max(128, -(-C // 128) * 128)       # lane-dense classifier width

    # --- batch tiling: ~256 token rows per step fills the MXU M dim (v6e/v7x);
    #     TB is the largest divisor of B not exceeding that target (robust for
    #     any B), so nb >= 2 at realistic batch keeps both v7x TCs busy.
    target_tb = max(1, 256 // (2 * S))
    TB = max(d for d in range(1, B + 1) if B % d == 0 and d <= target_tb)
    nb = B // TB
    TBP = ((TB + 7) // 8) * 8                 # sublane-padded rows per out tile
    T = TB * S                                # tokens per branch per tile

    # --- algebraic fusions done once in the wrapper (tiny XLA ops) -----------
    # encoder folded into the table: onehot @ tok_emb @ W_enc == onehot @ E
    e_tab = (jnp.dot(params["tok_emb"], params["w_enc"], precision=DOT_PREC)
             + params["b_enc"])                                     # [V, H]

    # pooling matrix: P[i, b, t*S+s] = (b==t) * mask[i*TB+t, s] / clamp(len)
    # NOTE: the same attention_mask is applied to both ori and gen streams,
    # matching the reference module's forward signature.
    mask_f = attention_mask.astype(jnp.float32)                     # [B, S]
    inv_len = 1.0 / jnp.maximum(jnp.sum(mask_f, axis=1, keepdims=True), 1e-9)
    pool = (mask_f * inv_len).reshape(nb, TB, S)                    # [nb,TB,S]
    eye = jnp.eye(TB, dtype=jnp.float32)
    p_blk = (eye[None, :, :, None] * pool[:, None, :, :]).reshape(nb, TB, T)
    p_blk = jnp.pad(p_blk, ((0, 0), (0, TBP - TB), (0, 0)))         # [nb,TBP,T]

    # per-tile stacked ids: [ori tokens of tile ; gen tokens of tile]
    # clamp to [0, V-1] to match jnp.take's clamping for out-of-range ids.
    ids_ori_r = jnp.clip(input_ids_ori.astype(jnp.int32), 0, V - 1).reshape(nb, T)
    ids_gen_r = jnp.clip(input_ids_gen.astype(jnp.int32), 0, V - 1).reshape(nb, T)
    ids_stacked = jnp.stack([ids_ori_r, ids_gen_r], axis=1).reshape(2 * B * S, 1)

    # lane-dense, split classifier parameters (no lane concat in the kernel)
    w_pad = jnp.zeros((2 * H, CPAD), jnp.float32).at[:, :C].set(params["w_cls"])
    b_pad = jnp.zeros((1, CPAD), jnp.float32).at[:, :C].set(params["b_cls"])
    w0, w1 = w_pad[:H], w_pad[H:]

    out = pl.pallas_call(
        dpic_kernel,
        out_shape=jax.ShapeDtypeStruct((nb * TBP, CPAD), jnp.float32),
        grid=(nb,),
        in_specs=[
            pl.BlockSpec((2 * T, 1), lambda i: (i, 0)),        # stacked ids
            pl.BlockSpec((1, TBP, T), lambda i: (i, 0, 0)),    # pooling matrix
            pl.BlockSpec((V, H), lambda i: (0, 0)),            # fused table E
            pl.BlockSpec((H, CPAD), lambda i: (0, 0)),         # classifier W[:H]
            pl.BlockSpec((H, CPAD), lambda i: (0, 0)),         # classifier W[H:]
            pl.BlockSpec((1, CPAD), lambda i: (0, 0)),         # classifier bias
        ],
        out_specs=pl.BlockSpec((TBP, CPAD), lambda i: (i, 0)),
        compiler_params=pltpu.CompilerParams(
            dimension_semantics=("parallel",)),
    )(ids_stacked, p_blk, e_tab, w0, w1, b_pad)

    # slice away sublane padding and lane padding (layout plumbing, not compute)
    return out.reshape(nb, TBP, CPAD)[:, :TB, :C].reshape(B, C)


# ------------------------- pure-JAX reference -------------------------------
def dpic_reference(params, input_ids_ori, input_ids_gen, attention_mask):
    def get_embeddings(ids):
        emb = jnp.take(params["tok_emb"], ids, axis=0)                  # [B,S,H]
        h = jnp.tanh(jnp.matmul(emb, params["w_enc"], precision=DOT_PREC)
                     + params["b_enc"][0])
        m = attention_mask.astype(jnp.float32)[:, :, None]
        s = jnp.sum(h * m, axis=1)
        d = jnp.maximum(jnp.sum(m, axis=1), 1e-9)   # == torch.clamp(min=1e-9)
        return s / d

    cat = jnp.concatenate([get_embeddings(input_ids_ori),
                           get_embeddings(input_ids_gen)], axis=1)
    return jnp.matmul(cat, params["w_cls"], precision=DOT_PREC) + params["b_cls"][0]


# --------------------------------- main --------------------------------------
if __name__ == "__main__":
    key = jax.random.PRNGKey(0)
    k_emb, k_enc, k_cls, k_ids1, k_ids2 = jax.random.split(key, 5)

    params = {
        "tok_emb": jax.random.normal(k_emb, (VOCAB, HIDDEN), jnp.float32) * 0.02,
        "w_enc":   jax.random.normal(k_enc, (HIDDEN, HIDDEN), jnp.float32) * 0.1,
        "b_enc":   jnp.zeros((1, HIDDEN), jnp.float32),
        "w_cls":   jax.random.normal(k_cls, (2 * HIDDEN, NUM_CLASSES), jnp.float32) * 0.1,
        "b_cls":   jnp.zeros((1, NUM_CLASSES), jnp.float32),
    }

    input_ids_ori = jax.random.randint(k_ids1, (BATCH, SEQ), 0, VOCAB, jnp.int32)
    input_ids_gen = jax.random.randint(k_ids2, (BATCH, SEQ), 0, VOCAB, jnp.int32)
    # mask with some padding positions
    attention_mask = (jnp.arange(SEQ)[None, :] <
                      jnp.array([[SEQ], [SEQ - 3]])).astype(jnp.int32)

    logits = dpic_forward(params, input_ids_ori, input_ids_gen, attention_mask)
    jax.block_until_ready(logits)

    ref = dpic_reference(params, input_ids_ori, input_ids_gen, attention_mask)
    assert logits.shape == (BATCH, NUM_CLASSES)
    assert jnp.allclose(logits, ref, atol=1e-4, rtol=1e-4), (logits, ref)

    print("KERNEL_OK")
</pallas_src>

<mosaic_0001>
module attributes {stable_mosaic.version = 11 : i64} {
  func.func @dpic_kernel(%arg0: i32, %arg1: memref<32x1xi32, #tpu.memory_space<vmem>>, %arg2: memref<1x8x16xf32, #tpu.memory_space<vmem>>, %arg3: memref<128x128xf32, #tpu.memory_space<vmem>>, %arg4: memref<128x128xf32, #tpu.memory_space<vmem>>, %arg5: memref<128x128xf32, #tpu.memory_space<vmem>>, %arg6: memref<1x128xf32, #tpu.memory_space<vmem>>, %arg7: memref<8x128xf32, #tpu.memory_space<vmem>>) attributes {dimension_semantics = [#tpu.dimension_semantics<parallel>], iteration_bounds = array<i64: 1>, scalar_prefetch = 0 : i64, scratch_operands = 0 : i64, tpu.core_type = #tpu.core_type<tc>, window_params = [{transform_indices = @transform_0, window_bounds = array<i64: 32, 1>}, {transform_indices = @transform_1, window_bounds = array<i64: 1, 8, 16>}, {pipeline_mode = #tpu.pipeline_mode<synchronous>, transform_indices = @transform_2, window_bounds = array<i64: 128, 128>}, {pipeline_mode = #tpu.pipeline_mode<synchronous>, transform_indices = @transform_3, window_bounds = array<i64: 128, 128>}, {pipeline_mode = #tpu.pipeline_mode<synchronous>, transform_indices = @transform_4, window_bounds = array<i64: 128, 128>}, {pipeline_mode = #tpu.pipeline_mode<synchronous>, transform_indices = @transform_5, window_bounds = array<i64: 1, 128>}, {transform_indices = @transform_6, window_bounds = array<i64: 8, 128>}]} {
    %c0 = arith.constant 0 : index
    %c0_0 = arith.constant 0 : index
    %0 = vector.load %arg1[%c0, %c0_0] : memref<32x1xi32, #tpu.memory_space<vmem>>, vector<32x1xi32>
    %1 = tpu.iota {dimensions = array<i32: 1>} : vector<32x128xi32>
    %2 = vector.broadcast %0 : vector<32x1xi32> to vector<32x128xi32>
    %3 = arith.cmpi eq, %1, %2 : vector<32x128xi32>
    %4 = arith.extui %3 : vector<32x128xi1> to vector<32x128xi32>
    %5 = arith.sitofp %4 : vector<32x128xi32> to vector<32x128xf32>
    %c0_1 = arith.constant 0 : index
    %c0_2 = arith.constant 0 : index
    %6 = vector.load %arg3[%c0_1, %c0_2] : memref<128x128xf32, #tpu.memory_space<vmem>>, vector<128x128xf32>
    %cst = arith.constant dense<0.000000e+00> : vector<32x128xf32>
    %7 = tpu.matmul %5, %6, %cst {dimension_numbers = #tpu.dot_dimension_numbers<[1], [0], [0], [1], [0, 0, 1, 1], [], []>, precision = #tpu.contract_precision<fp32>} : vector<32x128xf32>, vector<128x128xf32>, vector<32x128xf32> -> vector<32x128xf32>
    %8 = math.tanh %7 : vector<32x128xf32>
    %c0_3 = arith.constant 0 : index
    %c0_4 = arith.constant 0 : index
    %c0_5 = arith.constant 0 : index
    %9 = vector.load %arg2[%c0_3, %c0_4, %c0_5] : memref<1x8x16xf32, #tpu.memory_space<vmem>>, vector<1x8x16xf32>
    %10 = vector.shape_cast %9 : vector<1x8x16xf32> to vector<8x16xf32>
    %11 = vector.extract_strided_slice %8 {offsets = [0, 0], sizes = [16, 128], strides = [1, 1]} : vector<32x128xf32> to vector<16x128xf32>
    %cst_6 = arith.constant dense<0.000000e+00> : vector<8x128xf32>
    %12 = tpu.matmul %10, %11, %cst_6 {dimension_numbers = #tpu.dot_dimension_numbers<[1], [0], [0], [1], [0, 0, 1, 1], [], []>, precision = #tpu.contract_precision<fp32>} : vector<8x16xf32>, vector<16x128xf32>, vector<8x128xf32> -> vector<8x128xf32>
    %13 = vector.extract_strided_slice %8 {offsets = [16, 0], sizes = [16, 128], strides = [1, 1]} : vector<32x128xf32> to vector<16x128xf32>
    %cst_7 = arith.constant dense<0.000000e+00> : vector<8x128xf32>
    %14 = tpu.matmul %10, %13, %cst_7 {dimension_numbers = #tpu.dot_dimension_numbers<[1], [0], [0], [1], [0, 0, 1, 1], [], []>, precision = #tpu.contract_precision<fp32>} : vector<8x16xf32>, vector<16x128xf32>, vector<8x128xf32> -> vector<8x128xf32>
    %c0_8 = arith.constant 0 : index
    %c0_9 = arith.constant 0 : index
    %15 = vector.load %arg4[%c0_8, %c0_9] : memref<128x128xf32, #tpu.memory_space<vmem>>, vector<128x128xf32>
    %cst_10 = arith.constant dense<0.000000e+00> : vector<8x128xf32>
    %16 = tpu.matmul %12, %15, %cst_10 {dimension_numbers = #tpu.dot_dimension_numbers<[1], [0], [0], [1], [0, 0, 1, 1], [], []>, precision = #tpu.contract_precision<fp32>} : vector<8x128xf32>, vector<128x128xf32>, vector<8x128xf32> -> vector<8x128xf32>
    %c0_11 = arith.constant 0 : index
    %c0_12 = arith.constant 0 : index
    %17 = vector.load %arg5[%c0_11, %c0_12] : memref<128x128xf32, #tpu.memory_space<vmem>>, vector<128x128xf32>
    %cst_13 = arith.constant dense<0.000000e+00> : vector<8x128xf32>
    %18 = tpu.matmul %14, %17, %cst_13 {dimension_numbers = #tpu.dot_dimension_numbers<[1], [0], [0], [1], [0, 0, 1, 1], [], []>, precision = #tpu.contract_precision<fp32>} : vector<8x128xf32>, vector<128x128xf32>, vector<8x128xf32> -> vector<8x128xf32>
    %19 = arith.addf %16, %18 : vector<8x128xf32>
    %c0_14 = arith.constant 0 : index
    %c0_15 = arith.constant 0 : index
    %20 = vector.load %arg6[%c0_14, %c0_15] : memref<1x128xf32, #tpu.memory_space<vmem>>, vector<1x128xf32>
    %21 = vector.broadcast %20 : vector<1x128xf32> to vector<8x128xf32>
    %22 = arith.addf %19, %21 : vector<8x128xf32>
    %c0_16 = arith.constant 0 : index
    %c0_17 = arith.constant 0 : index
    %23 = vector.load %arg7[%c0_16, %c0_17] : memref<8x128xf32, #tpu.memory_space<vmem>>, vector<8x128xf32>
    tpu.vector_store %arg7[%c0_16, %c0_17], %22 {strides = array<i32>} : memref<8x128xf32, #tpu.memory_space<vmem>>, vector<8x128xf32>,
    return
  }
  func.func @transform_0(%arg0: i32) -> (i32, i32) {
    %c0_i32 = arith.constant 0 : i32
    %c0_i32_0 = arith.constant 0 : i32
    return %arg0, %c0_i32 : i32, i32
  }
  func.func @transform_1(%arg0: i32) -> (i32, i32, i32) {
    %c0_i32 = arith.constant 0 : i32
    %c0_i32_0 = arith.constant 0 : i32
    %c0_i32_1 = arith.constant 0 : i32
    return %arg0, %c0_i32, %c0_i32_0 : i32, i32, i32
  }
  func.func @transform_2(%arg0: i32) -> (i32, i32) {
    %c0_i32 = arith.constant 0 : i32
    %c0_i32_0 = arith.constant 0 : i32
    %c0_i32_1 = arith.constant 0 : i32
    return %c0_i32, %c0_i32_0 : i32, i32
  }
  func.func @transform_3(%arg0: i32) -> (i32, i32) {
    %c0_i32 = arith.constant 0 : i32
    %c0_i32_0 = arith.constant 0 : i32
    %c0_i32_1 = arith.constant 0 : i32
    return %c0_i32, %c0_i32_0 : i32, i32
  }
  func.func @transform_4(%arg0: i32) -> (i32, i32) {
    %c0_i32 = arith.constant 0 : i32
    %c0_i32_0 = arith.constant 0 : i32
    %c0_i32_1 = arith.constant 0 : i32
    return %c0_i32, %c0_i32_0 : i32, i32
  }
  func.func @transform_5(%arg0: i32) -> (i32, i32) {
    %c0_i32 = arith.constant 0 : i32
    %c0_i32_0 = arith.constant 0 : i32
    %c0_i32_1 = arith.constant 0 : i32
    return %c0_i32, %c0_i32_0 : i32, i32
  }
  func.func @transform_6(%arg0: i32) -> (i32, i32) {
    %c0_i32 = arith.constant 0 : i32
    %c0_i32_0 = arith.constant 0 : i32
    return %arg0, %c0_i32 : i32, i32
  }
}

</mosaic_0001>

<llo_original>
// kernel: tpu_custom_call.1
$region0: #{tpu_custom_call.1}
  #allocation0 [shape = 'u32[]', space=smem, size = 0x4, offset = 0x4, fixed_abs, tag = 'smem constant byte address 0x4 - core index']
  #allocation1 [shape = 'u32[72,128]{1,0:T(1,128)}', space=vmem, size = 0x9000, scoped, tag = 'internal scratch']
  %s0 = inlined_call_operand.vmem [shape: s32[32,1], index: 0, kind: input, shape index: {}]
  %s1 = inlined_call_operand.vmem [shape: f32[1,8,16], index: 1, kind: input, shape index: {}]
  %s2 = inlined_call_operand.hbm [shape: f32[128,128], index: 2, kind: input, shape index: {}]
  %s3 = inlined_call_operand.hbm [shape: f32[128,128], index: 3, kind: input, shape index: {}]
  %s4 = inlined_call_operand.hbm [shape: f32[128,128], index: 4, kind: input, shape index: {}]
  %s5 = inlined_call_operand.vmem [shape: f32[1,128], index: 5, kind: input, shape index: {}]
  %s6 = inlined_call_operand.hbm [shape: f32[8,128], index: 6, kind: output, shape index: {}]
  %s7 = sld [smem:[#allocation0]]
  $region46: #{tpu_custom_call.1} parent=0
    _
  %s9 = ssub.s32 1, %s7
  %s10 = scalar_select 0, %s9, %s7
  $region1: #{tpu_custom_call.1} parent=0
    #allocation2 [shape = 'u8[65536]{0}', space=vmem, size = 0x10000, scoped, tag = 'input window, operand 2, single buffered']
    #allocation3 [shape = 's32[1]{0}', space=sflag, size = 0x4, scoped, tag = 'scoped memory for tpu_custom_call.1']
    #allocation4 [shape = 's32[1]{0}', space=sflag, size = 0x4, scoped, tag = 'scoped memory for tpu_custom_call.1']
    #allocation5 [shape = 'u8[65536]{0}', space=vmem, size = 0x10000, scoped, tag = 'input window, operand 3, single buffered']
    #allocation6 [shape = 's32[1]{0}', space=sflag, size = 0x4, scoped, tag = 'scoped memory for tpu_custom_call.1']
    #allocation7 [shape = 'u8[65536]{0}', space=vmem, size = 0x10000, scoped, tag = 'input window, operand 4, single buffered']
    #allocation8 [shape = 'u8[4096]{0}', space=vmem, size = 0x1000, scoped, tag = 'output window, operand 0, single buffered']
    %11 = vsyncpa [#allocation3], 0
    %12 = vsyncpa [#allocation6], 0
    %13 = vsyncpa [#allocation4], 0
    // Predicated region
    $region2: #{tpu_custom_call.1} parent=1 // pred_check
      _
    $region3: #{tpu_custom_call.1} parent=1 // pred_check_branch
      %15 = sbr.rel (0) target = $region5
    $region4: #{tpu_custom_call.1} parent=1 // pred_region
      _
    $region5: #{tpu_custom_call.1} parent=1 // pred_fallthru
      _
    // Predicated region
    $region6: #{tpu_custom_call.1} parent=1 // pred_check
      _
    $region7: #{tpu_custom_call.1} parent=1 // pred_check_branch
      %17 = sbr.rel (0) target = $region9
    $region8: #{tpu_custom_call.1} parent=1 // pred_region
      _
    $region9: #{tpu_custom_call.1} parent=1 // pred_fallthru
      _
    // Predicated region
    $region10: #{tpu_custom_call.1} parent=1 // pred_check
      _
    $region11: #{tpu_custom_call.1} parent=1 // pred_check_branch
      %19 = sbr.rel (0) target = $region13
    $region12: #{tpu_custom_call.1} parent=1 // pred_region
      %21 = vsyncadd [#allocation3], 0
      %s22 = sshll.u32 %s2, 4
      %s23 = int_to_ptr.hbm [resolvable:$true] %s22
      %s24 = sshll.u32 [#allocation2], 4
      %s25 = int_to_ptr.vmem [resolvable:$true] %s24
      %30 = dma.hbm_to_vmem [thread:$0]  %s23, 2048, %s25, [#allocation3], 128, 128, 8
    $region13: #{tpu_custom_call.1} parent=1 // pred_fallthru
      _
    // Predicated region
    $region14: #{tpu_custom_call.1} parent=1 // pred_check
      _
    $region15: #{tpu_custom_call.1} parent=1 // pred_check_branch
      %32 = sbr.rel (0) target = $region17
    $region16: #{tpu_custom_call.1} parent=1 // pred_region
      %34 = vsyncadd [#allocation6], 0
      %s35 = sshll.u32 %s3, 4
      %s36 = int_to_ptr.hbm [resolvable:$true] %s35
      %s37 = sshll.u32 [#allocation5], 4
      %s38 = int_to_ptr.vmem [resolvable:$true] %s37
      %43 = dma.hbm_to_vmem [thread:$0]  %s36, 2048, %s38, [#allocation6], 128, 128, 8
    $region17: #{tpu_custom_call.1} parent=1 // pred_fallthru
      _
    // Predicated region
    $region18: #{tpu_custom_call.1} parent=1 // pred_check
      _
    $region19: #{tpu_custom_call.1} parent=1 // pred_check_branch
      %45 = sbr.rel (0) target = $region21
    $region20: #{tpu_custom_call.1} parent=1 // pred_region
      %47 = vsyncadd [#allocation6], 0
      %s48 = sshll.u32 %s4, 4
      %s49 = int_to_ptr.hbm [resolvable:$true] %s48
      %s50 = sshll.u32 [#allocation7], 4
      %s51 = int_to_ptr.vmem [resolvable:$true] %s50
      %56 = dma.hbm_to_vmem [thread:$0]  %s49, 2048, %s51, [#allocation6], 128, 128, 8
    $region21: #{tpu_custom_call.1} parent=1 // pred_fallthru
      _
    // Predicated region
    $region22: #{tpu_custom_call.1} parent=1 // pred_check
      _
    $region23: #{tpu_custom_call.1} parent=1 // pred_check_branch
      %58 = sbr.rel (0) target = $region25
    $region24: #{tpu_custom_call.1} parent=1 // pred_region
      _
    $region25: #{tpu_custom_call.1} parent=1 // pred_fallthru
      _
    // Predicated region
    $region26: #{tpu_custom_call.1} parent=1 // pred_check
      _
    $region27: #{tpu_custom_call.1} parent=1 // pred_check_branch
      %60 = sbr.rel (0) target = $region29
    $region28: #{tpu_custom_call.1} parent=1 // pred_region
      %62 = dma.done [#allocation3], 2048
    $region29: #{tpu_custom_call.1} parent=1 // pred_fallthru
      _
    // Predicated region
    $region30: #{tpu_custom_call.1} parent=1 // pred_check
      _
    $region31: #{tpu_custom_call.1} parent=1 // pred_check_branch
      %64 = sbr.rel (0) target = $region33
    $region32: #{tpu_custom_call.1} parent=1 // pred_region
      %66 = dma.done [#allocation6], 2048
    $region33: #{tpu_custom_call.1} parent=1 // pred_fallthru
      _
    // Predicated region
    $region34: #{tpu_custom_call.1} parent=1 // pred_check
      _
    $region35: #{tpu_custom_call.1} parent=1 // pred_check_branch
      %68 = sbr.rel (0) target = $region37
    $region36: #{tpu_custom_call.1} parent=1 // pred_region
      %70 = dma.done [#allocation6], 2048
    $region37: #{tpu_custom_call.1} parent=1 // pred_fallthru
      _
    %v71 = vld [vmem:[%s0] sm:$0xff]
    %v72 = vld [vmem:[%s0 + $0x8] sm:$0xff]
    %v73 = vld [vmem:[%s0 + $0x10] sm:$0xff]
    %v74 = vld [vmem:[%s0 + $0x18] sm:$0xff]
    %v75 = vlaneseq
    %v76 = vand.u32 %v75, 127
    %77 = vset.pattern.permute.xlu0 0
    %78 = vperm.xlu0 %77, %v71
    %v79 = vpop.permute.xlu0 %78
    %80 = vset.pattern.permute.xlu0 0
    %81 = vperm.xlu0 %80, %v72
    %v82 = vpop.permute.xlu0 %81
    %83 = vset.pattern.permute.xlu0 0
    %84 = vperm.xlu0 %83, %v73
    %v85 = vpop.permute.xlu0 %84
    %86 = vset.pattern.permute.xlu0 0
    %87 = vperm.xlu0 %86, %v74
    %v88 = vpop.permute.xlu0 %87
    %vm89 = vcmp.eq.s32.totalorder %v76, %v79
    %vm90 = vcmp.eq.s32.totalorder %v76, %v82
    %vm91 = vcmp.eq.s32.totalorder %v76, %v85
    %vm92 = vcmp.eq.s32.totalorder %v76, %v88
    %v93 = vsel %vm89, 1, 0
    %v94 = vsel %vm90, 1, 0
    %v95 = vsel %vm91, 1, 0
    %v96 = vsel %vm92, 1, 0
    %v97 = vcvt.s32.f32 %v93
    %v98 = vcvt.s32.f32 %v94
    %v99 = vcvt.s32.f32 %v95
    %v100 = vcvt.s32.f32 %v96
    %v101 = vld [vmem:[#allocation2] sm:$0xff]
    %v102 = vld [vmem:[#allocation2 + $0x8] sm:$0xff]
    %v103 = vld [vmem:[#allocation2 + $0x10] sm:$0xff]
    %v104 = vld [vmem:[#allocation2 + $0x18] sm:$0xff]
    %v105 = vld [vmem:[#allocation2 + $0x20] sm:$0xff]
    %v106 = vld [vmem:[#allocation2 + $0x28] sm:$0xff]
    %v107 = vld [vmem:[#allocation2 + $0x30] sm:$0xff]
    %v108 = vld [vmem:[#allocation2 + $0x38] sm:$0xff]
    %v109 = vld [vmem:[#allocation2 + $0x40] sm:$0xff]
    %v110 = vld [vmem:[#allocation2 + $0x48] sm:$0xff]
    %v111 = vld [vmem:[#allocation2 + $0x50] sm:$0xff]
    %v112 = vld [vmem:[#allocation2 + $0x58] sm:$0xff]
    %v113 = vld [vmem:[#allocation2 + $0x60] sm:$0xff]
    %v114 = vld [vmem:[#allocation2 + $0x68] sm:$0xff]
    %v115 = vld [vmem:[#allocation2 + $0x70] sm:$0xff]
    %v116 = vld [vmem:[#allocation2 + $0x78] sm:$0xff]
    %v117 = vand.u32 %v116, 4294901760
    %118 = vmatpush.msra.mxu0 %v117
    %v119 = vand.u32 %v115, 4294901760
    %120 = vmatpush.msra.mxu0 %v119
    %v121 = vand.u32 %v114, 4294901760
    %122 = vmatpush.msra.mxu0 %v121
    %v123 = vand.u32 %v113, 4294901760
    %124 = vmatpush.msra.mxu0 %v123
    %v125 = vand.u32 %v112, 4294901760
    %126 = vmatpush.msra.mxu0 %v125
    %v127 = vand.u32 %v111, 4294901760
    %128 = vmatpush.msra.mxu0 %v127
    %v129 = vand.u32 %v110, 4294901760
    %130 = vmatpush.msra.mxu0 %v129
    %v131 = vand.u32 %v109, 4294901760
    %132 = vmatpush.msra.mxu0 %v131
    %v133 = vand.u32 %v108, 4294901760
    %134 = vmatpush.msra.mxu0 %v133
    %v135 = vand.u32 %v107, 4294901760
    %136 = vmatpush.msra.mxu0 %v135
    %v137 = vand.u32 %v106, 4294901760
    %138 = vmatpush.msra.mxu0 %v137
    %v139 = vand.u32 %v105, 4294901760
    %140 = vmatpush.msra.mxu0 %v139
    %v141 = vand.u32 %v104, 4294901760
    %142 = vmatpush.msra.mxu0 %v141
    %v143 = vand.u32 %v103, 4294901760
    %144 = vmatpush.msra.mxu0 %v143
    %v145 = vand.u32 %v102, 4294901760
    %146 = vmatpush.msra.mxu0 %v145
    %v147 = vand.u32 %v101, 4294901760
    %148 = vmatpush.msra.mxu0 %v147
    %v149 = vand.u32 %v97, 4294901760
    %v150 = vsub.f32 %v97, %v149
    %v151 = vand.u32 %v150, 4294901760
    %v152 = vsub.f32 %v150, %v151
    %v153 = vand.u32 %v152, 4294901760
    %154 = vmatmul.f32.gmra.mxu0 %v153
    %v155 = vpop.f32.mrf.mxu0
    %v156 = vadd.f32 0.0, %v155
    %v157 = vand.u32 %v98, 4294901760
    %v158 = vsub.f32 %v98, %v157
    %v159 = vand.u32 %v158, 4294901760
    %v160 = vsub.f32 %v158, %v159
    %v161 = vand.u32 %v160, 4294901760
    %162 = vmatmul.f32.gmra.mxu0 %v161
    %v163 = vpop.f32.mrf.mxu0
    %v164 = vadd.f32 0.0, %v163
    %v165 = vand.u32 %v99, 4294901760
    %v166 = vsub.f32 %v99, %v165
    %v167 = vand.u32 %v166, 4294901760
    %v168 = vsub.f32 %v166, %v167
    %v169 = vand.u32 %v168, 4294901760
    %170 = vmatmul.f32.gmra.mxu0 %v169
    %v171 = vpop.f32.mrf.mxu0
    %v172 = vadd.f32 0.0, %v171
    %v173 = vand.u32 %v100, 4294901760
    %v174 = vsub.f32 %v100, %v173
    %v175 = vand.u32 %v174, 4294901760
    %v176 = vsub.f32 %v174, %v175
    %v177 = vand.u32 %v176, 4294901760
    %178 = vmatmul.f32.gmra.mxu0 %v177
    %v179 = vpop.f32.mrf.mxu0
    %v180 = vadd.f32 0.0, %v179
    %181 = vdwg.mxu0
    %v182 = vand.u32 %v116, 4294901760
    %v183 = vsub.f32 %v116, %v182
    %v184 = vand.u32 %v183, 4294901760
    %v185 = vsub.f32 %v183, %v184
    %v186 = vand.u32 %v185, 4294901760
    %187 = vmatpush.msra.mxu0 %v186
    %v188 = vand.u32 %v115, 4294901760
    %v189 = vsub.f32 %v115, %v188
    %v190 = vand.u32 %v189, 4294901760
    %v191 = vsub.f32 %v189, %v190
    %v192 = vand.u32 %v191, 4294901760
    %193 = vmatpush.msra.mxu0 %v192
    %v194 = vand.u32 %v114, 4294901760
    %v195 = vsub.f32 %v114, %v194
    %v196 = vand.u32 %v195, 4294901760
    %v197 = vsub.f32 %v195, %v196
    %v198 = vand.u32 %v197, 4294901760
    %199 = vmatpush.msra.mxu0 %v198
    %v200 = vand.u32 %v113, 4294901760
    %v201 = vsub.f32 %v113, %v200
    %v202 = vand.u32 %v201, 4294901760
    %v203 = vsub.f32 %v201, %v202
    %v204 = vand.u32 %v203, 4294901760
    %205 = vmatpush.msra.mxu0 %v204
    %v206 = vand.u32 %v112, 4294901760
    %v207 = vsub.f32 %v112, %v206
    %v208 = vand.u32 %v207, 4294901760
    %v209 = vsub.f32 %v207, %v208
    %v210 = vand.u32 %v209, 4294901760
    %211 = vmatpush.msra.mxu0 %v210
    %v212 = vand.u32 %v111, 4294901760
    %v213 = vsub.f32 %v111, %v212
    %v214 = vand.u32 %v213, 4294901760
    %v215 = vsub.f32 %v213, %v214
    %v216 = vand.u32 %v215, 4294901760
    %217 = vmatpush.msra.mxu0 %v216
    %v218 = vand.u32 %v110, 4294901760
    %v219 = vsub.f32 %v110, %v218
    %v220 = vand.u32 %v219, 4294901760
    %v221 = vsub.f32 %v219, %v220
    %v222 = vand.u32 %v221, 4294901760
    %223 = vmatpush.msra.mxu0 %v222
    %v224 = vand.u32 %v109, 4294901760
    %v225 = vsub.f32 %v109, %v224
    %v226 = vand.u32 %v225, 4294901760
    %v227 = vsub.f32 %v225, %v226
    %v228 = vand.u32 %v227, 4294901760
    %229 = vmatpush.msra.mxu0 %v228
    %v230 = vand.u32 %v108, 4294901760
    %v231 = vsub.f32 %v108, %v230
    %v232 = vand.u32 %v231, 4294901760
    %v233 = vsub.f32 %v231, %v232
    %v234 = vand.u32 %v233, 4294901760
    %235 = vmatpush.msra.mxu0 %v234
    %v236 = vand.u32 %v107, 4294901760
    %v237 = vsub.f32 %v107, %v236
    %v238 = vand.u32 %v237, 4294901760
    %v239 = vsub.f32 %v237, %v238
    %v240 = vand.u32 %v239, 4294901760
    %241 = vmatpush.msra.mxu0 %v240
    %v242 = vand.u32 %v106, 4294901760
    %v243 = vsub.f32 %v106, %v242
    %v244 = vand.u32 %v243, 4294901760
    %v245 = vsub.f32 %v243, %v244
    %v246 = vand.u32 %v245, 4294901760
    %247 = vmatpush.msra.mxu0 %v246
    %v248 = vand.u32 %v105, 4294901760
    %v249 = vsub.f32 %v105, %v248
    %v250 = vand.u32 %v249, 4294901760
    %v251 = vsub.f32 %v249, %v250
    %v252 = vand.u32 %v251, 4294901760
    %253 = vmatpush.msra.mxu0 %v252
    %v254 = vand.u32 %v104, 4294901760
    %v255 = vsub.f32 %v104, %v254
    %v256 = vand.u32 %v255, 4294901760
    %v257 = vsub.f32 %v255, %v256
    %v258 = vand.u32 %v257, 4294901760
    %259 = vmatpush.msra.mxu0 %v258
    %v260 = vand.u32 %v103, 4294901760
    %v261 = vsub.f32 %v103, %v260
    %v262 = vand.u32 %v261, 4294901760
    %v263 = vsub.f32 %v261, %v262
    %v264 = vand.u32 %v263, 4294901760
    %265 = vmatpush.msra.mxu0 %v264
    %v266 = vand.u32 %v102, 4294901760
    %v267 = vsub.f32 %v102, %v266
    %v268 = vand.u32 %v267, 4294901760
    %v269 = vsub.f32 %v267, %v268
    %v270 = vand.u32 %v269, 4294901760
    %271 = vmatpush.msra.mxu0 %v270
    %v272 = vand.u32 %v101, 4294901760
    %v273 = vsub.f32 %v101, %v272
    %v274 = vand.u32 %v273, 4294901760
    %v275 = vsub.f32 %v273, %v274
    %v276 = vand.u32 %v275, 4294901760
    %277 = vmatpush.msra.mxu0 %v276
    %v278 = vand.u32 %v97, 4294901760
    %279 = vmatmul.f32.gmra.mxu0 %v278
    %v280 = vpop.f32.mrf.mxu0
    %v281 = vadd.f32 %v156, %v280
    %v282 = vand.u32 %v98, 4294901760
    %283 = vmatmul.f32.gmra.mxu0 %v282
    %v284 = vpop.f32.mrf.mxu0
    %v285 = vadd.f32 %v164, %v284
    %v286 = vand.u32 %v99, 4294901760
    %287 = vmatmul.f32.gmra.mxu0 %v286
    %v288 = vpop.f32.mrf.mxu0
    %v289 = vadd.f32 %v172, %v288
    %v290 = vand.u32 %v100, 4294901760
    %291 = vmatmul.f32.gmra.mxu0 %v290
    %v292 = vpop.f32.mrf.mxu0
    %v293 = vadd.f32 %v180, %v292
    %294 = vdwg.mxu0
    %v295 = vand.u32 %v116, 4294901760
    %v296 = vsub.f32 %v116, %v295
    %297 = vmatpush.msra.mxu0 %v296
    %v298 = vand.u32 %v115, 4294901760
    %v299 = vsub.f32 %v115, %v298
    %300 = vmatpush.msra.mxu0 %v299
    %v301 = vand.u32 %v114, 4294901760
    %v302 = vsub.f32 %v114, %v301
    %303 = vmatpush.msra.mxu0 %v302
    %v304 = vand.u32 %v113, 4294901760
    %v305 = vsub.f32 %v113, %v304
    %306 = vmatpush.msra.mxu0 %v305
    %v307 = vand.u32 %v112, 4294901760
    %v308 = vsub.f32 %v112, %v307
    %309 = vmatpush.msra.mxu0 %v308
    %v310 = vand.u32 %v111, 4294901760
    %v311 = vsub.f32 %v111, %v310
    %312 = vmatpush.msra.mxu0 %v311
    %v313 = vand.u32 %v110, 4294901760
    %v314 = vsub.f32 %v110, %v313
    %315 = vmatpush.msra.mxu0 %v314
    %v316 = vand.u32 %v109, 4294901760
    %v317 = vsub.f32 %v109, %v316
    %318 = vmatpush.msra.mxu0 %v317
    %v319 = vand.u32 %v108, 4294901760
    %v320 = vsub.f32 %v108, %v319
    %321 = vmatpush.msra.mxu0 %v320
    %v322 = vand.u32 %v107, 4294901760
    %v323 = vsub.f32 %v107, %v322
    %324 = vmatpush.msra.mxu0 %v323
    %v325 = vand.u32 %v106, 4294901760
    %v326 = vsub.f32 %v106, %v325
    %327 = vmatpush.msra.mxu0 %v326
    %v328 = vand.u32 %v105, 4294901760
    %v329 = vsub.f32 %v105, %v328
    %330 = vmatpush.msra.mxu0 %v329
    %v331 = vand.u32 %v104, 4294901760
    %v332 = vsub.f32 %v104, %v331
    %333 = vmatpush.msra.mxu0 %v332
    %v334 = vand.u32 %v103, 4294901760
    %v335 = vsub.f32 %v103, %v334
    %336 = vmatpush.msra.mxu0 %v335
    %v337 = vand.u32 %v102, 4294901760
    %v338 = vsub.f32 %v102, %v337
    %339 = vmatpush.msra.mxu0 %v338
    %v340 = vand.u32 %v101, 4294901760
    %v341 = vsub.f32 %v101, %v340
    %342 = vmatpush.msra.mxu0 %v341
    %v343 = vand.u32 %v97, 4294901760
    %v344 = vsub.f32 %v97, %v343
    %345 = vmatmul.f32.gmra.mxu0 %v344
    %v346 = vpop.f32.mrf.mxu0
    %v347 = vadd.f32 %v281, %v346
    %v348 = vand.u32 %v98, 4294901760
    %v349 = vsub.f32 %v98, %v348
    %350 = vmatmul.f32.gmra.mxu0 %v349
    %v351 = vpop.f32.mrf.mxu0
    %v352 = vadd.f32 %v285, %v351
    %v353 = vand.u32 %v99, 4294901760
    %v354 = vsub.f32 %v99, %v353
    %355 = vmatmul.f32.gmra.mxu0 %v354
    %v356 = vpop.f32.mrf.mxu0
    %v357 = vadd.f32 %v289, %v356
    %v358 = vand.u32 %v100, 4294901760
    %v359 = vsub.f32 %v100, %v358
    %360 = vmatmul.f32.gmra.mxu0 %v359
    %v361 = vpop.f32.mrf.mxu0
    %v362 = vadd.f32 %v293, %v361
    %363 = vdwg.mxu0
    %v364 = vand.u32 %v116, 4294901760
    %365 = vmatpush.msra.mxu0 %v364
    %v366 = vand.u32 %v115, 4294901760
    %367 = vmatpush.msra.mxu0 %v366
    %v368 = vand.u32 %v114, 4294901760
    %369 = vmatpush.msra.mxu0 %v368
    %v370 = vand.u32 %v113, 4294901760
    %371 = vmatpush.msra.mxu0 %v370
    %v372 = vand.u32 %v112, 4294901760
    %373 = vmatpush.msra.mxu0 %v372
    %v374 = vand.u32 %v111, 4294901760
    %375 = vmatpush.msra.mxu0 %v374
    %v376 = vand.u32 %v110, 4294901760
    %377 = vmatpush.msra.mxu0 %v376
    %v378 = vand.u32 %v109, 4294901760
    %379 = vmatpush.msra.mxu0 %v378
    %v380 = vand.u32 %v108, 4294901760
    %381 = vmatpush.msra.mxu0 %v380
    %v382 = vand.u32 %v107, 4294901760
    %383 = vmatpush.msra.mxu0 %v382
    %v384 = vand.u32 %v106, 4294901760
    %385 = vmatpush.msra.mxu0 %v384
    %v386 = vand.u32 %v105, 4294901760
    %387 = vmatpush.msra.mxu0 %v386
    %v388 = vand.u32 %v104, 4294901760
    %389 = vmatpush.msra.mxu0 %v388
    %v390 = vand.u32 %v103, 4294901760
    %391 = vmatpush.msra.mxu0 %v390
    %v392 = vand.u32 %v102, 4294901760
    %393 = vmatpush.msra.mxu0 %v392
    %v394 = vand.u32 %v101, 4294901760
    %395 = vmatpush.msra.mxu0 %v394
    %v396 = vand.u32 %v97, 4294901760
    %v397 = vsub.f32 %v97, %v396
    %v398 = vand.u32 %v397, 4294901760
    %399 = vmatmul.f32.gmra.mxu0 %v398
    %v400 = vpop.f32.mrf.mxu0
    %v401 = vadd.f32 %v347, %v400
    %v402 = vand.u32 %v98, 4294901760
    %v403 = vsub.f32 %v98, %v402
    %v404 = vand.u32 %v403, 4294901760
    %405 = vmatmul.f32.gmra.mxu0 %v404
    %v406 = vpop.f32.mrf.mxu0
    %v407 = vadd.f32 %v352, %v406
    %v408 = vand.u32 %v99, 4294901760
    %v409 = vsub.f32 %v99, %v408
    %v410 = vand.u32 %v409, 4294901760
    %411 = vmatmul.f32.gmra.mxu0 %v410
    %v412 = vpop.f32.mrf.mxu0
    %v413 = vadd.f32 %v357, %v412
    %v414 = vand.u32 %v100, 4294901760
    %v415 = vsub.f32 %v100, %v414
    %v416 = vand.u32 %v415, 4294901760
    %417 = vmatmul.f32.gmra.mxu0 %v416
    %v418 = vpop.f32.mrf.mxu0
    %v419 = vadd.f32 %v362, %v418
    %420 = vdwg.mxu0
    %v421 = vand.u32 %v116, 4294901760
    %v422 = vsub.f32 %v116, %v421
    %v423 = vand.u32 %v422, 4294901760
    %424 = vmatpush.msra.mxu0 %v423
    %v425 = vand.u32 %v115, 4294901760
    %v426 = vsub.f32 %v115, %v425
    %v427 = vand.u32 %v426, 4294901760
    %428 = vmatpush.msra.mxu0 %v427
    %v429 = vand.u32 %v114, 4294901760
    %v430 = vsub.f32 %v114, %v429
    %v431 = vand.u32 %v430, 4294901760
    %432 = vmatpush.msra.mxu0 %v431
    %v433 = vand.u32 %v113, 4294901760
    %v434 = vsub.f32 %v113, %v433
    %v435 = vand.u32 %v434, 4294901760
    %436 = vmatpush.msra.mxu0 %v435
    %v437 = vand.u32 %v112, 4294901760
    %v438 = vsub.f32 %v112, %v437
    %v439 = vand.u32 %v438, 4294901760
    %440 = vmatpush.msra.mxu0 %v439
    %v441 = vand.u32 %v111, 4294901760
    %v442 = vsub.f32 %v111, %v441
    %v443 = vand.u32 %v442, 4294901760
    %444 = vmatpush.msra.mxu0 %v443
    %v445 = vand.u32 %v110, 4294901760
    %v446 = vsub.f32 %v110, %v445
    %v447 = vand.u32 %v446, 4294901760
    %448 = vmatpush.msra.mxu0 %v447
    %v449 = vand.u32 %v109, 4294901760
    %v450 = vsub.f32 %v109, %v449
    %v451 = vand.u32 %v450, 4294901760
    %452 = vmatpush.msra.mxu0 %v451
    %v453 = vand.u32 %v108, 4294901760
    %v454 = vsub.f32 %v108, %v453
    %v455 = vand.u32 %v454, 4294901760
    %456 = vmatpush.msra.mxu0 %v455
    %v457 = vand.u32 %v107, 4294901760
    %v458 = vsub.f32 %v107, %v457
    %v459 = vand.u32 %v458, 4294901760
    %460 = vmatpush.msra.mxu0 %v459
    %v461 = vand.u32 %v106, 4294901760
    %v462 = vsub.f32 %v106, %v461
    %v463 = vand.u32 %v462, 4294901760
    %464 = vmatpush.msra.mxu0 %v463
    %v465 = vand.u32 %v105, 4294901760
    %v466 = vsub.f32 %v105, %v465
    %v467 = vand.u32 %v466, 4294901760
    %468 = vmatpush.msra.mxu0 %v467
    %v469 = vand.u32 %v104, 4294901760
    %v470 = vsub.f32 %v104, %v469
    %v471 = vand.u32 %v470, 4294901760
    %472 = vmatpush.msra.mxu0 %v471
    %v473 = vand.u32 %v103, 4294901760
    %v474 = vsub.f32 %v103, %v473
    %v475 = vand.u32 %v474, 4294901760
    %476 = vmatpush.msra.mxu0 %v475
    %v477 = vand.u32 %v102, 4294901760
    %v478 = vsub.f32 %v102, %v477
    %v479 = vand.u32 %v478, 4294901760
    %480 = vmatpush.msra.mxu0 %v479
    %v481 = vand.u32 %v101, 4294901760
    %v482 = vsub.f32 %v101, %v481
    %v483 = vand.u32 %v482, 4294901760
    %484 = vmatpush.msra.mxu0 %v483
    %v485 = vand.u32 %v97, 4294901760
    %486 = vmatmul.f32.gmra.mxu0 %v485
    %v487 = vpop.f32.mrf.mxu0
    %v488 = vadd.f32 %v401, %v487
    %v489 = vand.u32 %v98, 4294901760
    %490 = vmatmul.f32.gmra.mxu0 %v489
    %v491 = vpop.f32.mrf.mxu0
    %v492 = vadd.f32 %v407, %v491
    %v493 = vand.u32 %v99, 4294901760
    %494 = vmatmul.f32.gmra.mxu0 %v493
    %v495 = vpop.f32.mrf.mxu0
    %v496 = vadd.f32 %v413, %v495
    %v497 = vand.u32 %v100, 4294901760
    %498 = vmatmul.f32.gmra.mxu0 %v497
    %v499 = vpop.f32.mrf.mxu0
    %v500 = vadd.f32 %v419, %v499
    %501 = vdwg.mxu0
    %v502 = vand.u32 %v116, 4294901760
    %503 = vmatpush.msra.mxu0 %v502
    %v504 = vand.u32 %v115, 4294901760
    %505 = vmatpush.msra.mxu0 %v504
    %v506 = vand.u32 %v114, 4294901760
    %507 = vmatpush.msra.mxu0 %v506
    %v508 = vand.u32 %v113, 4294901760
    %509 = vmatpush.msra.mxu0 %v508
    %v510 = vand.u32 %v112, 4294901760
    %511 = vmatpush.msra.mxu0 %v510
    %v512 = vand.u32 %v111, 4294901760
    %513 = vmatpush.msra.mxu0 %v512
    %v514 = vand.u32 %v110, 4294901760
    %515 = vmatpush.msra.mxu0 %v514
    %v516 = vand.u32 %v109, 4294901760
    %517 = vmatpush.msra.mxu0 %v516
    %v518 = vand.u32 %v108, 4294901760
    %519 = vmatpush.msra.mxu0 %v518
    %v520 = vand.u32 %v107, 4294901760
    %521 = vmatpush.msra.mxu0 %v520
    %v522 = vand.u32 %v106, 4294901760
    %523 = vmatpush.msra.mxu0 %v522
    %v524 = vand.u32 %v105, 4294901760
    %525 = vmatpush.msra.mxu0 %v524
    %v526 = vand.u32 %v104, 4294901760
    %527 = vmatpush.msra.mxu0 %v526
    %v528 = vand.u32 %v103, 4294901760
    %529 = vmatpush.msra.mxu0 %v528
    %v530 = vand.u32 %v102, 4294901760
    %531 = vmatpush.msra.mxu0 %v530
    %v532 = vand.u32 %v101, 4294901760
    %533 = vmatpush.msra.mxu0 %v532
    %v534 = vand.u32 %v97, 4294901760
    %535 = vmatmul.f32.gmra.mxu0 %v534
    %v536 = vpop.f32.mrf.mxu0
    %v537 = vadd.f32 %v488, %v536
    %v538 = vand.u32 %v98, 4294901760
    %539 = vmatmul.f32.gmra.mxu0 %v538
    %v540 = vpop.f32.mrf.mxu0
    %v541 = vadd.f32 %v492, %v540
    %v542 = vand.u32 %v99, 4294901760
    %543 = vmatmul.f32.gmra.mxu0 %v542
    %v544 = vpop.f32.mrf.mxu0
    %v545 = vadd.f32 %v496, %v544
    %v546 = vand.u32 %v100, 4294901760
    %547 = vmatmul.f32.gmra.mxu0 %v546
    %v548 = vpop.f32.mrf.mxu0
    %v549 = vadd.f32 %v500, %v548
    %550 = vdwg.mxu0
    %v551 = vtanh.pop %v537
    %v552 = vtanh.pop %v541
    %v553 = vtanh.pop %v545
    %v554 = vtanh.pop %v549
    %v555 = vld [vmem:[%s1] sm:$0xff]
    %vm556 = vcmask 130048
    %v558 = vsel %vm556, %v555, 0
    %560 = vmatpush.msra.mxu0 0.0
    %561 = vmatpush.msra.mxu0 0.0
    %562 = vmatpush.msra.mxu0 0.0
    %563 = vmatpush.msra.mxu0 0.0
    %564 = vmatpush.msra.mxu0 0.0
    %565 = vmatpush.msra.mxu0 0.0
    %566 = vmatpush.msra.mxu0 0.0
    %567 = vmatpush.msra.mxu0 0.0
    %568 = vmatpush.msra.mxu0 0.0
    %569 = vmatpush.msra.mxu0 0.0
    %570 = vmatpush.msra.mxu0 0.0
    %571 = vmatpush.msra.mxu0 0.0
    %572 = vmatpush.msra.mxu0 0.0
    %573 = vmatpush.msra.mxu0 0.0
    %v574 = vand.u32 %v552, 4294901760
    %575 = vmatpush.msra.mxu0 %v574
    %v576 = vand.u32 %v551, 4294901760
    %577 = vmatpush.msra.mxu0 %v576
    %v578 = vand.u32 %v558, 4294901760
    %v579 = vsub.f32 %v558, %v578
    %v580 = vand.u32 %v579, 4294901760
    %v581 = vsub.f32 %v579, %v580
    %v582 = vand.u32 %v581, 4294901760
    %583 = vmatmul.f32.gmra.mxu0 %v582
    %v584 = vpop.f32.mrf.mxu0
    %v585 = vadd.f32 0.0, %v584
    %586 = vdwg.mxu0
    %587 = vmatpush.msra.mxu0 0.0
    %588 = vmatpush.msra.mxu0 0.0
    %589 = vmatpush.msra.mxu0 0.0
    %590 = vmatpush.msra.mxu0 0.0
    %591 = vmatpush.msra.mxu0 0.0
    %592 = vmatpush.msra.mxu0 0.0
    %593 = vmatpush.msra.mxu0 0.0
    %594 = vmatpush.msra.mxu0 0.0
    %595 = vmatpush.msra.mxu0 0.0
    %596 = vmatpush.msra.mxu0 0.0
    %597 = vmatpush.msra.mxu0 0.0
    %598 = vmatpush.msra.mxu0 0.0
    %599 = vmatpush.msra.mxu0 0.0
    %600 = vmatpush.msra.mxu0 0.0
    %v601 = vand.u32 %v552, 4294901760
    %v602 = vsub.f32 %v552, %v601
    %v603 = vand.u32 %v602, 4294901760
    %v604 = vsub.f32 %v602, %v603
    %v605 = vand.u32 %v604, 4294901760
    %606 = vmatpush.msra.mxu0 %v605
    %v607 = vand.u32 %v551, 4294901760
    %v608 = vsub.f32 %v551, %v607
    %v609 = vand.u32 %v608, 4294901760
    %v610 = vsub.f32 %v608, %v609
    %v611 = vand.u32 %v610, 4294901760
    %612 = vmatpush.msra.mxu0 %v611
    %v613 = vand.u32 %v558, 4294901760
    %614 = vmatmul.f32.gmra.mxu0 %v613
    %v615 = vpop.f32.mrf.mxu0
    %v616 = vadd.f32 %v585, %v615
    %617 = vdwg.mxu0
    %618 = vmatpush.msra.mxu0 0.0
    %619 = vmatpush.msra.mxu0 0.0
    %620 = vmatpush.msra.mxu0 0.0
    %621 = vmatpush.msra.mxu0 0.0
    %622 = vmatpush.msra.mxu0 0.0
    %623 = vmatpush.msra.mxu0 0.0
    %624 = vmatpush.msra.mxu0 0.0
    %625 = vmatpush.msra.mxu0 0.0
    %626 = vmatpush.msra.mxu0 0.0
    %627 = vmatpush.msra.mxu0 0.0
    %628 = vmatpush.msra.mxu0 0.0
    %629 = vmatpush.msra.mxu0 0.0
    %630 = vmatpush.msra.mxu0 0.0
    %631 = vmatpush.msra.mxu0 0.0
    %v632 = vand.u32 %v552, 4294901760
    %v633 = vsub.f32 %v552, %v632
    %634 = vmatpush.msra.mxu0 %v633
    %v635 = vand.u32 %v551, 4294901760
    %v636 = vsub.f32 %v551, %v635
    %637 = vmatpush.msra.mxu0 %v636
    %v638 = vand.u32 %v558, 4294901760
    %v639 = vsub.f32 %v558, %v638
    %640 = vmatmul.f32.gmra.mxu0 %v639
    %v641 = vpop.f32.mrf.mxu0
    %v642 = vadd.f32 %v616, %v641
    %643 = vdwg.mxu0
    %644 = vmatpush.msra.mxu0 0.0
    %645 = vmatpush.msra.mxu0 0.0
    %646 = vmatpush.msra.mxu0 0.0
    %647 = vmatpush.msra.mxu0 0.0
    %648 = vmatpush.msra.mxu0 0.0
    %649 = vmatpush.msra.mxu0 0.0
    %650 = vmatpush.msra.mxu0 0.0
    %651 = vmatpush.msra.mxu0 0.0
    %652 = vmatpush.msra.mxu0 0.0
    %653 = vmatpush.msra.mxu0 0.0
    %654 = vmatpush.msra.mxu0 0.0
    %655 = vmatpush.msra.mxu0 0.0
    %656 = vmatpush.msra.mxu0 0.0
    %657 = vmatpush.msra.mxu0 0.0
    %v658 = vand.u32 %v552, 4294901760
    %659 = vmatpush.msra.mxu0 %v658
    %v660 = vand.u32 %v551, 4294901760
    %661 = vmatpush.msra.mxu0 %v660
    %v662 = vand.u32 %v558, 4294901760
    %v663 = vsub.f32 %v558, %v662
    %v664 = vand.u32 %v663, 4294901760
    %665 = vmatmul.f32.gmra.mxu0 %v664
    %v666 = vpop.f32.mrf.mxu0
    %v667 = vadd.f32 %v642, %v666
    %668 = vdwg.mxu0
    %669 = vmatpush.msra.mxu0 0.0
    %670 = vmatpush.msra.mxu0 0.0
    %671 = vmatpush.msra.mxu0 0.0
    %672 = vmatpush.msra.mxu0 0.0
    %673 = vmatpush.msra.mxu0 0.0
    %674 = vmatpush.msra.mxu0 0.0
    %675 = vmatpush.msra.mxu0 0.0
    %676 = vmatpush.msra.mxu0 0.0
    %677 = vmatpush.msra.mxu0 0.0
    %678 = vmatpush.msra.mxu0 0.0
    %679 = vmatpush.msra.mxu0 0.0
    %680 = vmatpush.msra.mxu0 0.0
    %681 = vmatpush.msra.mxu0 0.0
    %682 = vmatpush.msra.mxu0 0.0
    %v683 = vand.u32 %v552, 4294901760
    %v684 = vsub.f32 %v552, %v683
    %v685 = vand.u32 %v684, 4294901760
    %686 = vmatpush.msra.mxu0 %v685
    %v687 = vand.u32 %v551, 4294901760
    %v688 = vsub.f32 %v551, %v687
    %v689 = vand.u32 %v688, 4294901760
    %690 = vmatpush.msra.mxu0 %v689
    %v691 = vand.u32 %v558, 4294901760
    %692 = vmatmul.f32.gmra.mxu0 %v691
    %v693 = vpop.f32.mrf.mxu0
    %v694 = vadd.f32 %v667, %v693
    %695 = vdwg.mxu0
    %696 = vmatpush.msra.mxu0 0.0
    %697 = vmatpush.msra.mxu0 0.0
    %698 = vmatpush.msra.mxu0 0.0
    %699 = vmatpush.msra.mxu0 0.0
    %700 = vmatpush.msra.mxu0 0.0
    %701 = vmatpush.msra.mxu0 0.0
    %702 = vmatpush.msra.mxu0 0.0
    %703 = vmatpush.msra.mxu0 0.0
    %704 = vmatpush.msra.mxu0 0.0
    %705 = vmatpush.msra.mxu0 0.0
    %706 = vmatpush.msra.mxu0 0.0
    %707 = vmatpush.msra.mxu0 0.0
    %708 = vmatpush.msra.mxu0 0.0
    %709 = vmatpush.msra.mxu0 0.0
    %v710 = vand.u32 %v552, 4294901760
    %711 = vmatpush.msra.mxu0 %v710
    %v712 = vand.u32 %v551, 4294901760
    %713 = vmatpush.msra.mxu0 %v712
    %v714 = vand.u32 %v558, 4294901760
    %715 = vmatmul.f32.gmra.mxu0 %v714
    %v716 = vpop.f32.mrf.mxu0
    %v717 = vadd.f32 %v694, %v716
    %718 = vdwg.mxu0
    %719 = vmatpush.msra.mxu0 0.0
    %720 = vmatpush.msra.mxu0 0.0
    %721 = vmatpush.msra.mxu0 0.0
    %722 = vmatpush.msra.mxu0 0.0
    %723 = vmatpush.msra.mxu0 0.0
    %724 = vmatpush.msra.mxu0 0.0
    %725 = vmatpush.msra.mxu0 0.0
    %726 = vmatpush.msra.mxu0 0.0
    %727 = vmatpush.msra.mxu0 0.0
    %728 = vmatpush.msra.mxu0 0.0
    %729 = vmatpush.msra.mxu0 0.0
    %730 = vmatpush.msra.mxu0 0.0
    %731 = vmatpush.msra.mxu0 0.0
    %732 = vmatpush.msra.mxu0 0.0
    %v733 = vand.u32 %v554, 4294901760
    %734 = vmatpush.msra.mxu0 %v733
    %v735 = vand.u32 %v553, 4294901760
    %736 = vmatpush.msra.mxu0 %v735
    %v737 = vand.u32 %v558, 4294901760
    %v738 = vsub.f32 %v558, %v737
    %v739 = vand.u32 %v738, 4294901760
    %v740 = vsub.f32 %v738, %v739
    %v741 = vand.u32 %v740, 4294901760
    %742 = vmatmul.f32.gmra.mxu0 %v741
    %v743 = vpop.f32.mrf.mxu0
    %v744 = vadd.f32 0.0, %v743
    %745 = vdwg.mxu0
    %746 = vmatpush.msra.mxu0 0.0
    %747 = vmatpush.msra.mxu0 0.0
    %748 = vmatpush.msra.mxu0 0.0
    %749 = vmatpush.msra.mxu0 0.0
    %750 = vmatpush.msra.mxu0 0.0
    %751 = vmatpush.msra.mxu0 0.0
    %752 = vmatpush.msra.mxu0 0.0
    %753 = vmatpush.msra.mxu0 0.0
    %754 = vmatpush.msra.mxu0 0.0
    %755 = vmatpush.msra.mxu0 0.0
    %756 = vmatpush.msra.mxu0 0.0
    %757 = vmatpush.msra.mxu0 0.0
    %758 = vmatpush.msra.mxu0 0.0
    %759 = vmatpush.msra.mxu0 0.0
    %v760 = vand.u32 %v554, 4294901760
    %v761 = vsub.f32 %v554, %v760
    %v762 = vand.u32 %v761, 4294901760
    %v763 = vsub.f32 %v761, %v762
    %v764 = vand.u32 %v763, 4294901760
    %765 = vmatpush.msra.mxu0 %v764
    %v766 = vand.u32 %v553, 4294901760
    %v767 = vsub.f32 %v553, %v766
    %v768 = vand.u32 %v767, 4294901760
    %v769 = vsub.f32 %v767, %v768
    %v770 = vand.u32 %v769, 4294901760
    %771 = vmatpush.msra.mxu0 %v770
    %v772 = vand.u32 %v558, 4294901760
    %773 = vmatmul.f32.gmra.mxu0 %v772
    %v774 = vpop.f32.mrf.mxu0
    %v775 = vadd.f32 %v744, %v774
    %776 = vdwg.mxu0
    %777 = vmatpush.msra.mxu0 0.0
    %778 = vmatpush.msra.mxu0 0.0
    %779 = vmatpush.msra.mxu0 0.0
    %780 = vmatpush.msra.mxu0 0.0
    %781 = vmatpush.msra.mxu0 0.0
    %782 = vmatpush.msra.mxu0 0.0
    %783 = vmatpush.msra.mxu0 0.0
    %784 = vmatpush.msra.mxu0 0.0
    %785 = vmatpush.msra.mxu0 0.0
    %786 = vmatpush.msra.mxu0 0.0
    %787 = vmatpush.msra.mxu0 0.0
    %788 = vmatpush.msra.mxu0 0.0
    %789 = vmatpush.msra.mxu0 0.0
    %790 = vmatpush.msra.mxu0 0.0
    %v791 = vand.u32 %v554, 4294901760
    %v792 = vsub.f32 %v554, %v791
    %793 = vmatpush.msra.mxu0 %v792
    %v794 = vand.u32 %v553, 4294901760
    %v795 = vsub.f32 %v553, %v794
    %796 = vmatpush.msra.mxu0 %v795
    %v797 = vand.u32 %v558, 4294901760
    %v798 = vsub.f32 %v558, %v797
    %799 = vmatmul.f32.gmra.mxu0 %v798
    %v800 = vpop.f32.mrf.mxu0
    %v801 = vadd.f32 %v775, %v800
    %802 = vdwg.mxu0
    %803 = vmatpush.msra.mxu0 0.0
    %804 = vmatpush.msra.mxu0 0.0
    %805 = vmatpush.msra.mxu0 0.0
    %806 = vmatpush.msra.mxu0 0.0
    %807 = vmatpush.msra.mxu0 0.0
    %808 = vmatpush.msra.mxu0 0.0
    %809 = vmatpush.msra.mxu0 0.0
    %810 = vmatpush.msra.mxu0 0.0
    %811 = vmatpush.msra.mxu0 0.0
    %812 = vmatpush.msra.mxu0 0.0
    %813 = vmatpush.msra.mxu0 0.0
    %814 = vmatpush.msra.mxu0 0.0
    %815 = vmatpush.msra.mxu0 0.0
    %816 = vmatpush.msra.mxu0 0.0
    %v817 = vand.u32 %v554, 4294901760
    %818 = vmatpush.msra.mxu0 %v817
    %v819 = vand.u32 %v553, 4294901760
    %820 = vmatpush.msra.mxu0 %v819
    %v821 = vand.u32 %v558, 4294901760
    %v822 = vsub.f32 %v558, %v821
    %v823 = vand.u32 %v822, 4294901760
    %824 = vmatmul.f32.gmra.mxu0 %v823
    %v825 = vpop.f32.mrf.mxu0
    %v826 = vadd.f32 %v801, %v825
    %827 = vdwg.mxu0
    %828 = vmatpush.msra.mxu0 0.0
    %829 = vmatpush.msra.mxu0 0.0
    %830 = vmatpush.msra.mxu0 0.0
    %831 = vmatpush.msra.mxu0 0.0
    %832 = vmatpush.msra.mxu0 0.0
    %833 = vmatpush.msra.mxu0 0.0
    %834 = vmatpush.msra.mxu0 0.0
    %835 = vmatpush.msra.mxu0 0.0
    %836 = vmatpush.msra.mxu0 0.0
    %837 = vmatpush.msra.mxu0 0.0
    %838 = vmatpush.msra.mxu0 0.0
    %839 = vmatpush.msra.mxu0 0.0
    %840 = vmatpush.msra.mxu0 0.0
    %841 = vmatpush.msra.mxu0 0.0
    %v842 = vand.u32 %v554, 4294901760
    %v843 = vsub.f32 %v554, %v842
    %v844 = vand.u32 %v843, 4294901760
    %845 = vmatpush.msra.mxu0 %v844
    %v846 = vand.u32 %v553, 4294901760
    %v847 = vsub.f32 %v553, %v846
    %v848 = vand.u32 %v847, 4294901760
    %849 = vmatpush.msra.mxu0 %v848
    %v850 = vand.u32 %v558, 4294901760
    %851 = vmatmul.f32.gmra.mxu0 %v850
    %v852 = vpop.f32.mrf.mxu0
    %v853 = vadd.f32 %v826, %v852
    %854 = vdwg.mxu0
    %855 = vmatpush.msra.mxu0 0.0
    %856 = vmatpush.msra.mxu0 0.0
    %857 = vmatpush.msra.mxu0 0.0
    %858 = vmatpush.msra.mxu0 0.0
    %859 = vmatpush.msra.mxu0 0.0
    %860 = vmatpush.msra.mxu0 0.0
    %861 = vmatpush.msra.mxu0 0.0
    %862 = vmatpush.msra.mxu0 0.0
    %863 = vmatpush.msra.mxu0 0.0
    %864 = vmatpush.msra.mxu0 0.0
    %865 = vmatpush.msra.mxu0 0.0
    %866 = vmatpush.msra.mxu0 0.0
    %867 = vmatpush.msra.mxu0 0.0
    %868 = vmatpush.msra.mxu0 0.0
    %v869 = vand.u32 %v554, 4294901760
    %870 = vmatpush.msra.mxu0 %v869
    %v871 = vand.u32 %v553, 4294901760
    %872 = vmatpush.msra.mxu0 %v871
    %v873 = vand.u32 %v558, 4294901760
    %874 = vmatmul.f32.gmra.mxu0 %v873
    %v875 = vpop.f32.mrf.mxu0
    %v876 = vadd.f32 %v853, %v875
    %877 = vdwg.mxu0
    %v878 = vld [vmem:[#allocation5] sm:$0xff]
    %v879 = vld [vmem:[#allocation5 + $0x8] sm:$0xff]
    %v880 = vld [vmem:[#allocation5 + $0x10] sm:$0xff]
    %v881 = vld [vmem:[#allocation5 + $0x18] sm:$0xff]
    %v882 = vld [vmem:[#allocation5 + $0x20] sm:$0xff]
    %v883 = vld [vmem:[#allocation5 + $0x28] sm:$0xff]
    %v884 = vld [vmem:[#allocation5 + $0x30] sm:$0xff]
    %v885 = vld [vmem:[#allocation5 + $0x38] sm:$0xff]
    %v886 = vld [vmem:[#allocation5 + $0x40] sm:$0xff]
    %v887 = vld [vmem:[#allocation5 + $0x48] sm:$0xff]
    %v888 = vld [vmem:[#allocation5 + $0x50] sm:$0xff]
    %v889 = vld [vmem:[#allocation5 + $0x58] sm:$0xff]
    %v890 = vld [vmem:[#allocation5 + $0x60] sm:$0xff]
    %v891 = vld [vmem:[#allocation5 + $0x68] sm:$0xff]
    %v892 = vld [vmem:[#allocation5 + $0x70] sm:$0xff]
    %v893 = vld [vmem:[#allocation5 + $0x78] sm:$0xff]
    %v894 = vld [vmem:[#allocation7] sm:$0xff]
    %v895 = vld [vmem:[#allocation7 + $0x8] sm:$0xff]
    %v896 = vld [vmem:[#allocation7 + $0x10] sm:$0xff]
    %v897 = vld [vmem:[#allocation7 + $0x18] sm:$0xff]
    %v898 = vld [vmem:[#allocation7 + $0x20] sm:$0xff]
    %v899 = vld [vmem:[#allocation7 + $0x28] sm:$0xff]
    %v900 = vld [vmem:[#allocation7 + $0x30] sm:$0xff]
    %v901 = vld [vmem:[#allocation7 + $0x38] sm:$0xff]
    %v902 = vld [vmem:[#allocation7 + $0x40] sm:$0xff]
    %v903 = vld [vmem:[#allocation7 + $0x48] sm:$0xff]
    %v904 = vld [vmem:[#allocation7 + $0x50] sm:$0xff]
    %v905 = vld [vmem:[#allocation7 + $0x58] sm:$0xff]
    %v906 = vld [vmem:[#allocation7 + $0x60] sm:$0xff]
    %v907 = vld [vmem:[#allocation7 + $0x68] sm:$0xff]
    %v908 = vld [vmem:[#allocation7 + $0x70] sm:$0xff]
    %v909 = vld [vmem:[#allocation7 + $0x78] sm:$0xff]
    %v910 = vand.u32 %v909, 4294901760
    %911 = vmatpush.msra.mxu0 %v910
    %v912 = vand.u32 %v908, 4294901760
    %913 = vmatpush.msra.mxu0 %v912
    %v914 = vand.u32 %v907, 4294901760
    %915 = vmatpush.msra.mxu0 %v914
    %v916 = vand.u32 %v906, 4294901760
    %917 = vmatpush.msra.mxu0 %v916
    %v918 = vand.u32 %v905, 4294901760
    %919 = vmatpush.msra.mxu0 %v918
    %v920 = vand.u32 %v904, 4294901760
    %921 = vmatpush.msra.mxu0 %v920
    %v922 = vand.u32 %v903, 4294901760
    %923 = vmatpush.msra.mxu0 %v922
    %v924 = vand.u32 %v902, 4294901760
    %925 = vmatpush.msra.mxu0 %v924
    %v926 = vand.u32 %v901, 4294901760
    %927 = vmatpush.msra.mxu0 %v926
    %v928 = vand.u32 %v900, 4294901760
    %929 = vmatpush.msra.mxu0 %v928
    %v930 = vand.u32 %v899, 4294901760
    %931 = vmatpush.msra.mxu0 %v930
    %v932 = vand.u32 %v898, 4294901760
    %933 = vmatpush.msra.mxu0 %v932
    %v934 = vand.u32 %v897, 4294901760
    %935 = vmatpush.msra.mxu0 %v934
    %v936 = vand.u32 %v896, 4294901760
    %937 = vmatpush.msra.mxu0 %v936
    %v938 = vand.u32 %v895, 4294901760
    %939 = vmatpush.msra.mxu0 %v938
    %v940 = vand.u32 %v894, 4294901760
    %941 = vmatpush.msra.mxu0 %v940
    %v942 = vand.u32 %v876, 4294901760
    %v943 = vsub.f32 %v876, %v942
    %v944 = vand.u32 %v943, 4294901760
    %v945 = vsub.f32 %v943, %v944
    %v946 = vand.u32 %v945, 4294901760
    %947 = vmatmul.f32.gmra.mxu0 %v946
    %v948 = vpop.f32.mrf.mxu0
    %v949 = vadd.f32 0.0, %v948
    %950 = vdwg.mxu0
    %v951 = vand.u32 %v909, 4294901760
    %v952 = vsub.f32 %v909, %v951
    %v953 = vand.u32 %v952, 4294901760
    %v954 = vsub.f32 %v952, %v953
    %v955 = vand.u32 %v954, 4294901760
    %956 = vmatpush.msra.mxu0 %v955
    %v957 = vand.u32 %v908, 4294901760
    %v958 = vsub.f32 %v908, %v957
    %v959 = vand.u32 %v958, 4294901760
    %v960 = vsub.f32 %v958, %v959
    %v961 = vand.u32 %v960, 4294901760
    %962 = vmatpush.msra.mxu0 %v961
    %v963 = vand.u32 %v907, 4294901760
    %v964 = vsub.f32 %v907, %v963
    %v965 = vand.u32 %v964, 4294901760
    %v966 = vsub.f32 %v964, %v965
    %v967 = vand.u32 %v966, 4294901760
    %968 = vmatpush.msra.mxu0 %v967
    %v969 = vand.u32 %v906, 4294901760
    %v970 = vsub.f32 %v906, %v969
    %v971 = vand.u32 %v970, 4294901760
    %v972 = vsub.f32 %v970, %v971
    %v973 = vand.u32 %v972, 4294901760
    %974 = vmatpush.msra.mxu0 %v973
    %v975 = vand.u32 %v905, 4294901760
    %v976 = vsub.f32 %v905, %v975
    %v977 = vand.u32 %v976, 4294901760
    %v978 = vsub.f32 %v976, %v977
    %v979 = vand.u32 %v978, 4294901760
    %980 = vmatpush.msra.mxu0 %v979
    %v981 = vand.u32 %v904, 4294901760
    %v982 = vsub.f32 %v904, %v981
    %v983 = vand.u32 %v982, 4294901760
    %v984 = vsub.f32 %v982, %v983
    %v985 = vand.u32 %v984, 4294901760
    %986 = vmatpush.msra.mxu0 %v985
    %v987 = vand.u32 %v903, 4294901760
    %v988 = vsub.f32 %v903, %v987
    %v989 = vand.u32 %v988, 4294901760
    %v990 = vsub.f32 %v988, %v989
    %v991 = vand.u32 %v990, 4294901760
    %992 = vmatpush.msra.mxu0 %v991
    %v993 = vand.u32 %v902, 4294901760
    %v994 = vsub.f32 %v902, %v993
    %v995 = vand.u32 %v994, 4294901760
    %v996 = vsub.f32 %v994, %v995
    %v997 = vand.u32 %v996, 4294901760
    %998 = vmatpush.msra.mxu0 %v997
    %v999 = vand.u32 %v901, 4294901760
    %v1000 = vsub.f32 %v901, %v999
    %v1001 = vand.u32 %v1000, 4294901760
    %v1002 = vsub.f32 %v1000, %v1001
    %v1003 = vand.u32 %v1002, 4294901760
    %1004 = vmatpush.msra.mxu0 %v1003
    %v1005 = vand.u32 %v900, 4294901760
    %v1006 = vsub.f32 %v900, %v1005
    %v1007 = vand.u32 %v1006, 4294901760
    %v1008 = vsub.f32 %v1006, %v1007
    %v1009 = vand.u32 %v1008, 4294901760
    %1010 = vmatpush.msra.mxu0 %v1009
    %v1011 = vand.u32 %v899, 4294901760
    %v1012 = vsub.f32 %v899, %v1011
    %v1013 = vand.u32 %v1012, 4294901760
    %v1014 = vsub.f32 %v1012, %v1013
    %v1015 = vand.u32 %v1014, 4294901760
    %1016 = vmatpush.msra.mxu0 %v1015
    %v1017 = vand.u32 %v898, 4294901760
    %v1018 = vsub.f32 %v898, %v1017
    %v1019 = vand.u32 %v1018, 4294901760
    %v1020 = vsub.f32 %v1018, %v1019
    %v1021 = vand.u32 %v1020, 4294901760
    %1022 = vmatpush.msra.mxu0 %v1021
    %v1023 = vand.u32 %v897, 4294901760
    %v1024 = vsub.f32 %v897, %v1023
    %v1025 = vand.u32 %v1024, 4294901760
    %v1026 = vsub.f32 %v1024, %v1025
    %v1027 = vand.u32 %v1026, 4294901760
    %1028 = vmatpush.msra.mxu0 %v1027
    %v1029 = vand.u32 %v896, 4294901760
    %v1030 = vsub.f32 %v896, %v1029
    %v1031 = vand.u32 %v1030, 4294901760
    %v1032 = vsub.f32 %v1030, %v1031
    %v1033 = vand.u32 %v1032, 4294901760
    %1034 = vmatpush.msra.mxu0 %v1033
    %v1035 = vand.u32 %v895, 4294901760
    %v1036 = vsub.f32 %v895, %v1035
    %v1037 = vand.u32 %v1036, 4294901760
    %v1038 = vsub.f32 %v1036, %v1037
    %v1039 = vand.u32 %v1038, 4294901760
    %1040 = vmatpush.msra.mxu0 %v1039
    %v1041 = vand.u32 %v894, 4294901760
    %v1042 = vsub.f32 %v894, %v1041
    %v1043 = vand.u32 %v1042, 4294901760
    %v1044 = vsub.f32 %v1042, %v1043
    %v1045 = vand.u32 %v1044, 4294901760
    %1046 = vmatpush.msra.mxu0 %v1045
    %v1047 = vand.u32 %v876, 4294901760
    %1048 = vmatmul.f32.gmra.mxu0 %v1047
    %v1049 = vpop.f32.mrf.mxu0
    %v1050 = vadd.f32 %v949, %v1049
    %1051 = vdwg.mxu0
    %v1052 = vand.u32 %v909, 4294901760
    %v1053 = vsub.f32 %v909, %v1052
    %1054 = vmatpush.msra.mxu0 %v1053
    %v1055 = vand.u32 %v908, 4294901760
    %v1056 = vsub.f32 %v908, %v1055
    %1057 = vmatpush.msra.mxu0 %v1056
    %v1058 = vand.u32 %v907, 4294901760
    %v1059 = vsub.f32 %v907, %v1058
    %1060 = vmatpush.msra.mxu0 %v1059
    %v1061 = vand.u32 %v906, 4294901760
    %v1062 = vsub.f32 %v906, %v1061
    %1063 = vmatpush.msra.mxu0 %v1062
    %v1064 = vand.u32 %v905, 4294901760
    %v1065 = vsub.f32 %v905, %v1064
    %1066 = vmatpush.msra.mxu0 %v1065
    %v1067 = vand.u32 %v904, 4294901760
    %v1068 = vsub.f32 %v904, %v1067
    %1069 = vmatpush.msra.mxu0 %v1068
    %v1070 = vand.u32 %v903, 4294901760
    %v1071 = vsub.f32 %v903, %v1070
    %1072 = vmatpush.msra.mxu0 %v1071
    %v1073 = vand.u32 %v902, 4294901760
    %v1074 = vsub.f32 %v902, %v1073
    %1075 = vmatpush.msra.mxu0 %v1074
    %v1076 = vand.u32 %v901, 4294901760
    %v1077 = vsub.f32 %v901, %v1076
    %1078 = vmatpush.msra.mxu0 %v1077
    %v1079 = vand.u32 %v900, 4294901760
    %v1080 = vsub.f32 %v900, %v1079
    %1081 = vmatpush.msra.mxu0 %v1080
    %v1082 = vand.u32 %v899, 4294901760
    %v1083 = vsub.f32 %v899, %v1082
    %1084 = vmatpush.msra.mxu0 %v1083
    %v1085 = vand.u32 %v898, 4294901760
    %v1086 = vsub.f32 %v898, %v1085
    %1087 = vmatpush.msra.mxu0 %v1086
    %v1088 = vand.u32 %v897, 4294901760
    %v1089 = vsub.f32 %v897, %v1088
    %1090 = vmatpush.msra.mxu0 %v1089
    %v1091 = vand.u32 %v896, 4294901760
    %v1092 = vsub.f32 %v896, %v1091
    %1093 = vmatpush.msra.mxu0 %v1092
    %v1094 = vand.u32 %v895, 4294901760
    %v1095 = vsub.f32 %v895, %v1094
    %1096 = vmatpush.msra.mxu0 %v1095
    %v1097 = vand.u32 %v894, 4294901760
    %v1098 = vsub.f32 %v894, %v1097
    %1099 = vmatpush.msra.mxu0 %v1098
    %v1100 = vand.u32 %v876, 4294901760
    %v1101 = vsub.f32 %v876, %v1100
    %1102 = vmatmul.f32.gmra.mxu0 %v1101
    %v1103 = vpop.f32.mrf.mxu0
    %v1104 = vadd.f32 %v1050, %v1103
    %1105 = vdwg.mxu0
    %v1106 = vand.u32 %v909, 4294901760
    %1107 = vmatpush.msra.mxu0 %v1106
    %v1108 = vand.u32 %v908, 4294901760
    %1109 = vmatpush.msra.mxu0 %v1108
    %v1110 = vand.u32 %v907, 4294901760
    %1111 = vmatpush.msra.mxu0 %v1110
    %v1112 = vand.u32 %v906, 4294901760
    %1113 = vmatpush.msra.mxu0 %v1112
    %v1114 = vand.u32 %v905, 4294901760
    %1115 = vmatpush.msra.mxu0 %v1114
    %v1116 = vand.u32 %v904, 4294901760
    %1117 = vmatpush.msra.mxu0 %v1116
    %v1118 = vand.u32 %v903, 4294901760
    %1119 = vmatpush.msra.mxu0 %v1118
    %v1120 = vand.u32 %v902, 4294901760
    %1121 = vmatpush.msra.mxu0 %v1120
    %v1122 = vand.u32 %v901, 4294901760
    %1123 = vmatpush.msra.mxu0 %v1122
    %v1124 = vand.u32 %v900, 4294901760
    %1125 = vmatpush.msra.mxu0 %v1124
    %v1126 = vand.u32 %v899, 4294901760
    %1127 = vmatpush.msra.mxu0 %v1126
    %v1128 = vand.u32 %v898, 4294901760
    %1129 = vmatpush.msra.mxu0 %v1128
    %v1130 = vand.u32 %v897, 4294901760
    %1131 = vmatpush.msra.mxu0 %v1130
    %v1132 = vand.u32 %v896, 4294901760
    %1133 = vmatpush.msra.mxu0 %v1132
    %v1134 = vand.u32 %v895, 4294901760
    %1135 = vmatpush.msra.mxu0 %v1134
    %v1136 = vand.u32 %v894, 4294901760
    %1137 = vmatpush.msra.mxu0 %v1136
    %v1138 = vand.u32 %v876, 4294901760
    %v1139 = vsub.f32 %v876, %v1138
    %v1140 = vand.u32 %v1139, 4294901760
    %1141 = vmatmul.f32.gmra.mxu0 %v1140
    %v1142 = vpop.f32.mrf.mxu0
    %v1143 = vadd.f32 %v1104, %v1142
    %1144 = vdwg.mxu0
    %v1145 = vand.u32 %v909, 4294901760
    %v1146 = vsub.f32 %v909, %v1145
    %v1147 = vand.u32 %v1146, 4294901760
    %1148 = vmatpush.msra.mxu0 %v1147
    %v1149 = vand.u32 %v908, 4294901760
    %v1150 = vsub.f32 %v908, %v1149
    %v1151 = vand.u32 %v1150, 4294901760
    %1152 = vmatpush.msra.mxu0 %v1151
    %v1153 = vand.u32 %v907, 4294901760
    %v1154 = vsub.f32 %v907, %v1153
    %v1155 = vand.u32 %v1154, 4294901760
    %1156 = vmatpush.msra.mxu0 %v1155
    %v1157 = vand.u32 %v906, 4294901760
    %v1158 = vsub.f32 %v906, %v1157
    %v1159 = vand.u32 %v1158, 4294901760
    %1160 = vmatpush.msra.mxu0 %v1159
    %v1161 = vand.u32 %v905, 4294901760
    %v1162 = vsub.f32 %v905, %v1161
    %v1163 = vand.u32 %v1162, 4294901760
    %1164 = vmatpush.msra.mxu0 %v1163
    %v1165 = vand.u32 %v904, 4294901760
    %v1166 = vsub.f32 %v904, %v1165
    %v1167 = vand.u32 %v1166, 4294901760
    %1168 = vmatpush.msra.mxu0 %v1167
    %v1169 = vand.u32 %v903, 4294901760
    %v1170 = vsub.f32 %v903, %v1169
    %v1171 = vand.u32 %v1170, 4294901760
    %1172 = vmatpush.msra.mxu0 %v1171
    %v1173 = vand.u32 %v902, 4294901760
    %v1174 = vsub.f32 %v902, %v1173
    %v1175 = vand.u32 %v1174, 4294901760
    %1176 = vmatpush.msra.mxu0 %v1175
    %v1177 = vand.u32 %v901, 4294901760
    %v1178 = vsub.f32 %v901, %v1177
    %v1179 = vand.u32 %v1178, 4294901760
    %1180 = vmatpush.msra.mxu0 %v1179
    %v1181 = vand.u32 %v900, 4294901760
    %v1182 = vsub.f32 %v900, %v1181
    %v1183 = vand.u32 %v1182, 4294901760
    %1184 = vmatpush.msra.mxu0 %v1183
    %v1185 = vand.u32 %v899, 4294901760
    %v1186 = vsub.f32 %v899, %v1185
    %v1187 = vand.u32 %v1186, 4294901760
    %1188 = vmatpush.msra.mxu0 %v1187
    %v1189 = vand.u32 %v898, 4294901760
    %v1190 = vsub.f32 %v898, %v1189
    %v1191 = vand.u32 %v1190, 4294901760
    %1192 = vmatpush.msra.mxu0 %v1191
    %v1193 = vand.u32 %v897, 4294901760
    %v1194 = vsub.f32 %v897, %v1193
    %v1195 = vand.u32 %v1194, 4294901760
    %1196 = vmatpush.msra.mxu0 %v1195
    %v1197 = vand.u32 %v896, 4294901760
    %v1198 = vsub.f32 %v896, %v1197
    %v1199 = vand.u32 %v1198, 4294901760
    %1200 = vmatpush.msra.mxu0 %v1199
    %v1201 = vand.u32 %v895, 4294901760
    %v1202 = vsub.f32 %v895, %v1201
    %v1203 = vand.u32 %v1202, 4294901760
    %1204 = vmatpush.msra.mxu0 %v1203
    %v1205 = vand.u32 %v894, 4294901760
    %v1206 = vsub.f32 %v894, %v1205
    %v1207 = vand.u32 %v1206, 4294901760
    %1208 = vmatpush.msra.mxu0 %v1207
    %v1209 = vand.u32 %v876, 4294901760
    %1210 = vmatmul.f32.gmra.mxu0 %v1209
    %v1211 = vpop.f32.mrf.mxu0
    %v1212 = vadd.f32 %v1143, %v1211
    %1213 = vdwg.mxu0
    %v1214 = vand.u32 %v909, 4294901760
    %1215 = vmatpush.msra.mxu0 %v1214
    %v1216 = vand.u32 %v908, 4294901760
    %1217 = vmatpush.msra.mxu0 %v1216
    %v1218 = vand.u32 %v907, 4294901760
    %1219 = vmatpush.msra.mxu0 %v1218
    %v1220 = vand.u32 %v906, 4294901760
    %1221 = vmatpush.msra.mxu0 %v1220
    %v1222 = vand.u32 %v905, 4294901760
    %1223 = vmatpush.msra.mxu0 %v1222
    %v1224 = vand.u32 %v904, 4294901760
    %1225 = vmatpush.msra.mxu0 %v1224
    %v1226 = vand.u32 %v903, 4294901760
    %1227 = vmatpush.msra.mxu0 %v1226
    %v1228 = vand.u32 %v902, 4294901760
    %1229 = vmatpush.msra.mxu0 %v1228
    %v1230 = vand.u32 %v901, 4294901760
    %1231 = vmatpush.msra.mxu0 %v1230
    %v1232 = vand.u32 %v900, 4294901760
    %1233 = vmatpush.msra.mxu0 %v1232
    %v1234 = vand.u32 %v899, 4294901760
    %1235 = vmatpush.msra.mxu0 %v1234
    %v1236 = vand.u32 %v898, 4294901760
    %1237 = vmatpush.msra.mxu0 %v1236
    %v1238 = vand.u32 %v897, 4294901760
    %1239 = vmatpush.msra.mxu0 %v1238
    %v1240 = vand.u32 %v896, 4294901760
    %1241 = vmatpush.msra.mxu0 %v1240
    %v1242 = vand.u32 %v895, 4294901760
    %1243 = vmatpush.msra.mxu0 %v1242
    %v1244 = vand.u32 %v894, 4294901760
    %1245 = vmatpush.msra.mxu0 %v1244
    %v1246 = vand.u32 %v876, 4294901760
    %1247 = vmatmul.f32.gmra.mxu0 %v1246
    %v1248 = vpop.f32.mrf.mxu0
    %v1249 = vadd.f32 %v1212, %v1248
    %1250 = vdwg.mxu0
    %v1251 = vand.u32 %v893, 4294901760
    %1252 = vmatpush.msra.mxu0 %v1251
    %v1253 = vand.u32 %v892, 4294901760
    %1254 = vmatpush.msra.mxu0 %v1253
    %v1255 = vand.u32 %v891, 4294901760
    %1256 = vmatpush.msra.mxu0 %v1255
    %v1257 = vand.u32 %v890, 4294901760
    %1258 = vmatpush.msra.mxu0 %v1257
    %v1259 = vand.u32 %v889, 4294901760
    %1260 = vmatpush.msra.mxu0 %v1259
    %v1261 = vand.u32 %v888, 4294901760
    %1262 = vmatpush.msra.mxu0 %v1261
    %v1263 = vand.u32 %v887, 4294901760
    %1264 = vmatpush.msra.mxu0 %v1263
    %v1265 = vand.u32 %v886, 4294901760
    %1266 = vmatpush.msra.mxu0 %v1265
    %v1267 = vand.u32 %v885, 4294901760
    %1268 = vmatpush.msra.mxu0 %v1267
    %v1269 = vand.u32 %v884, 4294901760
    %1270 = vmatpush.msra.mxu0 %v1269
    %v1271 = vand.u32 %v883, 4294901760
    %1272 = vmatpush.msra.mxu0 %v1271
    %v1273 = vand.u32 %v882, 4294901760
    %1274 = vmatpush.msra.mxu0 %v1273
    %v1275 = vand.u32 %v881, 4294901760
    %1276 = vmatpush.msra.mxu0 %v1275
    %v1277 = vand.u32 %v880, 4294901760
    %1278 = vmatpush.msra.mxu0 %v1277
    %v1279 = vand.u32 %v879, 4294901760
    %1280 = vmatpush.msra.mxu0 %v1279
    %v1281 = vand.u32 %v878, 4294901760
    %1282 = vmatpush.msra.mxu0 %v1281
    %v1283 = vand.u32 %v717, 4294901760
    %v1284 = vsub.f32 %v717, %v1283
    %v1285 = vand.u32 %v1284, 4294901760
    %v1286 = vsub.f32 %v1284, %v1285
    %v1287 = vand.u32 %v1286, 4294901760
    %1288 = vmatmul.f32.gmra.mxu0 %v1287
    %v1289 = vpop.f32.mrf.mxu0
    %v1290 = vadd.f32 %v1249, %v1289
    %1291 = vdwg.mxu0
    %v1292 = vand.u32 %v893, 4294901760
    %v1293 = vsub.f32 %v893, %v1292
    %v1294 = vand.u32 %v1293, 4294901760
    %v1295 = vsub.f32 %v1293, %v1294
    %v1296 = vand.u32 %v1295, 4294901760
    %1297 = vmatpush.msra.mxu0 %v1296
    %v1298 = vand.u32 %v892, 4294901760
    %v1299 = vsub.f32 %v892, %v1298
    %v1300 = vand.u32 %v1299, 4294901760
    %v1301 = vsub.f32 %v1299, %v1300
    %v1302 = vand.u32 %v1301, 4294901760
    %1303 = vmatpush.msra.mxu0 %v1302
    %v1304 = vand.u32 %v891, 4294901760
    %v1305 = vsub.f32 %v891, %v1304
    %v1306 = vand.u32 %v1305, 4294901760
    %v1307 = vsub.f32 %v1305, %v1306
    %v1308 = vand.u32 %v1307, 4294901760
    %1309 = vmatpush.msra.mxu0 %v1308
    %v1310 = vand.u32 %v890, 4294901760
    %v1311 = vsub.f32 %v890, %v1310
    %v1312 = vand.u32 %v1311, 4294901760
    %v1313 = vsub.f32 %v1311, %v1312
    %v1314 = vand.u32 %v1313, 4294901760
    %1315 = vmatpush.msra.mxu0 %v1314
    %v1316 = vand.u32 %v889, 4294901760
    %v1317 = vsub.f32 %v889, %v1316
    %v1318 = vand.u32 %v1317, 4294901760
    %v1319 = vsub.f32 %v1317, %v1318
    %v1320 = vand.u32 %v1319, 4294901760
    %1321 = vmatpush.msra.mxu0 %v1320
    %v1322 = vand.u32 %v888, 4294901760
    %v1323 = vsub.f32 %v888, %v1322
    %v1324 = vand.u32 %v1323, 4294901760
    %v1325 = vsub.f32 %v1323, %v1324
    %v1326 = vand.u32 %v1325, 4294901760
    %1327 = vmatpush.msra.mxu0 %v1326
    %v1328 = vand.u32 %v887, 4294901760
    %v1329 = vsub.f32 %v887, %v1328
    %v1330 = vand.u32 %v1329, 4294901760
    %v1331 = vsub.f32 %v1329, %v1330
    %v1332 = vand.u32 %v1331, 4294901760
    %1333 = vmatpush.msra.mxu0 %v1332
    %v1334 = vand.u32 %v886, 4294901760
    %v1335 = vsub.f32 %v886, %v1334
    %v1336 = vand.u32 %v1335, 4294901760
    %v1337 = vsub.f32 %v1335, %v1336
    %v1338 = vand.u32 %v1337, 4294901760
    %1339 = vmatpush.msra.mxu0 %v1338
    %v1340 = vand.u32 %v885, 4294901760
    %v1341 = vsub.f32 %v885, %v1340
    %v1342 = vand.u32 %v1341, 4294901760
    %v1343 = vsub.f32 %v1341, %v1342
    %v1344 = vand.u32 %v1343, 4294901760
    %1345 = vmatpush.msra.mxu0 %v1344
    %v1346 = vand.u32 %v884, 4294901760
    %v1347 = vsub.f32 %v884, %v1346
    %v1348 = vand.u32 %v1347, 4294901760
    %v1349 = vsub.f32 %v1347, %v1348
    %v1350 = vand.u32 %v1349, 4294901760
    %1351 = vmatpush.msra.mxu0 %v1350
    %v1352 = vand.u32 %v883, 4294901760
    %v1353 = vsub.f32 %v883, %v1352
    %v1354 = vand.u32 %v1353, 4294901760
    %v1355 = vsub.f32 %v1353, %v1354
    %v1356 = vand.u32 %v1355, 4294901760
    %1357 = vmatpush.msra.mxu0 %v1356
    %v1358 = vand.u32 %v882, 4294901760
    %v1359 = vsub.f32 %v882, %v1358
    %v1360 = vand.u32 %v1359, 4294901760
    %v1361 = vsub.f32 %v1359, %v1360
    %v1362 = vand.u32 %v1361, 4294901760
    %1363 = vmatpush.msra.mxu0 %v1362
    %v1364 = vand.u32 %v881, 4294901760
    %v1365 = vsub.f32 %v881, %v1364
    %v1366 = vand.u32 %v1365, 4294901760
    %v1367 = vsub.f32 %v1365, %v1366
    %v1368 = vand.u32 %v1367, 4294901760
    %1369 = vmatpush.msra.mxu0 %v1368
    %v1370 = vand.u32 %v880, 4294901760
    %v1371 = vsub.f32 %v880, %v1370
    %v1372 = vand.u32 %v1371, 4294901760
    %v1373 = vsub.f32 %v1371, %v1372
    %v1374 = vand.u32 %v1373, 4294901760
    %1375 = vmatpush.msra.mxu0 %v1374
    %v1376 = vand.u32 %v879, 4294901760
    %v1377 = vsub.f32 %v879, %v1376
    %v1378 = vand.u32 %v1377, 4294901760
    %v1379 = vsub.f32 %v1377, %v1378
    %v1380 = vand.u32 %v1379, 4294901760
    %1381 = vmatpush.msra.mxu0 %v1380
    %v1382 = vand.u32 %v878, 4294901760
    %v1383 = vsub.f32 %v878, %v1382
    %v1384 = vand.u32 %v1383, 4294901760
    %v1385 = vsub.f32 %v1383, %v1384
    %v1386 = vand.u32 %v1385, 4294901760
    %1387 = vmatpush.msra.mxu0 %v1386
    %v1388 = vand.u32 %v717, 4294901760
    %1389 = vmatmul.f32.gmra.mxu0 %v1388
    %v1390 = vpop.f32.mrf.mxu0
    %v1391 = vadd.f32 %v1290, %v1390
    %1392 = vdwg.mxu0
    %v1393 = vand.u32 %v893, 4294901760
    %v1394 = vsub.f32 %v893, %v1393
    %1395 = vmatpush.msra.mxu0 %v1394
    %v1396 = vand.u32 %v892, 4294901760
    %v1397 = vsub.f32 %v892, %v1396
    %1398 = vmatpush.msra.mxu0 %v1397
    %v1399 = vand.u32 %v891, 4294901760
    %v1400 = vsub.f32 %v891, %v1399
    %1401 = vmatpush.msra.mxu0 %v1400
    %v1402 = vand.u32 %v890, 4294901760
    %v1403 = vsub.f32 %v890, %v1402
    %1404 = vmatpush.msra.mxu0 %v1403
    %v1405 = vand.u32 %v889, 4294901760
    %v1406 = vsub.f32 %v889, %v1405
    %1407 = vmatpush.msra.mxu0 %v1406
    %v1408 = vand.u32 %v888, 4294901760
    %v1409 = vsub.f32 %v888, %v1408
    %1410 = vmatpush.msra.mxu0 %v1409
    %v1411 = vand.u32 %v887, 4294901760
    %v1412 = vsub.f32 %v887, %v1411
    %1413 = vmatpush.msra.mxu0 %v1412
    %v1414 = vand.u32 %v886, 4294901760
    %v1415 = vsub.f32 %v886, %v1414
    %1416 = vmatpush.msra.mxu0 %v1415
    %v1417 = vand.u32 %v885, 4294901760
    %v1418 = vsub.f32 %v885, %v1417
    %1419 = vmatpush.msra.mxu0 %v1418
    %v1420 = vand.u32 %v884, 4294901760
    %v1421 = vsub.f32 %v884, %v1420
    %1422 = vmatpush.msra.mxu0 %v1421
    %v1423 = vand.u32 %v883, 4294901760
    %v1424 = vsub.f32 %v883, %v1423
    %1425 = vmatpush.msra.mxu0 %v1424
    %v1426 = vand.u32 %v882, 4294901760
    %v1427 = vsub.f32 %v882, %v1426
    %1428 = vmatpush.msra.mxu0 %v1427
    %v1429 = vand.u32 %v881, 4294901760
    %v1430 = vsub.f32 %v881, %v1429
    %1431 = vmatpush.msra.mxu0 %v1430
    %v1432 = vand.u32 %v880, 4294901760
    %v1433 = vsub.f32 %v880, %v1432
    %1434 = vmatpush.msra.mxu0 %v1433
    %v1435 = vand.u32 %v879, 4294901760
    %v1436 = vsub.f32 %v879, %v1435
    %1437 = vmatpush.msra.mxu0 %v1436
    %v1438 = vand.u32 %v878, 4294901760
    %v1439 = vsub.f32 %v878, %v1438
    %1440 = vmatpush.msra.mxu0 %v1439
    %v1441 = vand.u32 %v717, 4294901760
    %v1442 = vsub.f32 %v717, %v1441
    %1443 = vmatmul.f32.gmra.mxu0 %v1442
    %v1444 = vpop.f32.mrf.mxu0
    %v1445 = vadd.f32 %v1391, %v1444
    %1446 = vdwg.mxu0
    %v1447 = vand.u32 %v893, 4294901760
    %1448 = vmatpush.msra.mxu0 %v1447
    %v1449 = vand.u32 %v892, 4294901760
    %1450 = vmatpush.msra.mxu0 %v1449
    %v1451 = vand.u32 %v891, 4294901760
    %1452 = vmatpush.msra.mxu0 %v1451
    %v1453 = vand.u32 %v890, 4294901760
    %1454 = vmatpush.msra.mxu0 %v1453
    %v1455 = vand.u32 %v889, 4294901760
    %1456 = vmatpush.msra.mxu0 %v1455
    %v1457 = vand.u32 %v888, 4294901760
    %1458 = vmatpush.msra.mxu0 %v1457
    %v1459 = vand.u32 %v887, 4294901760
    %1460 = vmatpush.msra.mxu0 %v1459
    %v1461 = vand.u32 %v886, 4294901760
    %1462 = vmatpush.msra.mxu0 %v1461
    %v1463 = vand.u32 %v885, 4294901760
    %1464 = vmatpush.msra.mxu0 %v1463
    %v1465 = vand.u32 %v884, 4294901760
    %1466 = vmatpush.msra.mxu0 %v1465
    %v1467 = vand.u32 %v883, 4294901760
    %1468 = vmatpush.msra.mxu0 %v1467
    %v1469 = vand.u32 %v882, 4294901760
    %1470 = vmatpush.msra.mxu0 %v1469
    %v1471 = vand.u32 %v881, 4294901760
    %1472 = vmatpush.msra.mxu0 %v1471
    %v1473 = vand.u32 %v880, 4294901760
    %1474 = vmatpush.msra.mxu0 %v1473
    %v1475 = vand.u32 %v879, 4294901760
    %1476 = vmatpush.msra.mxu0 %v1475
    %v1477 = vand.u32 %v878, 4294901760
    %1478 = vmatpush.msra.mxu0 %v1477
    %v1479 = vand.u32 %v717, 4294901760
    %v1480 = vsub.f32 %v717, %v1479
    %v1481 = vand.u32 %v1480, 4294901760
    %1482 = vmatmul.f32.gmra.mxu0 %v1481
    %v1483 = vpop.f32.mrf.mxu0
    %v1484 = vadd.f32 %v1445, %v1483
    %1485 = vdwg.mxu0
    %v1486 = vand.u32 %v893, 4294901760
    %v1487 = vsub.f32 %v893, %v1486
    %v1488 = vand.u32 %v1487, 4294901760
    %1489 = vmatpush.msra.mxu0 %v1488
    %v1490 = vand.u32 %v892, 4294901760
    %v1491 = vsub.f32 %v892, %v1490
    %v1492 = vand.u32 %v1491, 4294901760
    %1493 = vmatpush.msra.mxu0 %v1492
    %v1494 = vand.u32 %v891, 4294901760
    %v1495 = vsub.f32 %v891, %v1494
    %v1496 = vand.u32 %v1495, 4294901760
    %1497 = vmatpush.msra.mxu0 %v1496
    %v1498 = vand.u32 %v890, 4294901760
    %v1499 = vsub.f32 %v890, %v1498
    %v1500 = vand.u32 %v1499, 4294901760
    %1501 = vmatpush.msra.mxu0 %v1500
    %v1502 = vand.u32 %v889, 4294901760
    %v1503 = vsub.f32 %v889, %v1502
    %v1504 = vand.u32 %v1503, 4294901760
    %1505 = vmatpush.msra.mxu0 %v1504
    %v1506 = vand.u32 %v888, 4294901760
    %v1507 = vsub.f32 %v888, %v1506
    %v1508 = vand.u32 %v1507, 4294901760
    %1509 = vmatpush.msra.mxu0 %v1508
    %v1510 = vand.u32 %v887, 4294901760
    %v1511 = vsub.f32 %v887, %v1510
    %v1512 = vand.u32 %v1511, 4294901760
    %1513 = vmatpush.msra.mxu0 %v1512
    %v1514 = vand.u32 %v886, 4294901760
    %v1515 = vsub.f32 %v886, %v1514
    %v1516 = vand.u32 %v1515, 4294901760
    %1517 = vmatpush.msra.mxu0 %v1516
    %v1518 = vand.u32 %v885, 4294901760
    %v1519 = vsub.f32 %v885, %v1518
    %v1520 = vand.u32 %v1519, 4294901760
    %1521 = vmatpush.msra.mxu0 %v1520
    %v1522 = vand.u32 %v884, 4294901760
    %v1523 = vsub.f32 %v884, %v1522
    %v1524 = vand.u32 %v1523, 4294901760
    %1525 = vmatpush.msra.mxu0 %v1524
    %v1526 = vand.u32 %v883, 4294901760
    %v1527 = vsub.f32 %v883, %v1526
    %v1528 = vand.u32 %v1527, 4294901760
    %1529 = vmatpush.msra.mxu0 %v1528
    %v1530 = vand.u32 %v882, 4294901760
    %v1531 = vsub.f32 %v882, %v1530
    %v1532 = vand.u32 %v1531, 4294901760
    %1533 = vmatpush.msra.mxu0 %v1532
    %v1534 = vand.u32 %v881, 4294901760
    %v1535 = vsub.f32 %v881, %v1534
    %v1536 = vand.u32 %v1535, 4294901760
    %1537 = vmatpush.msra.mxu0 %v1536
    %v1538 = vand.u32 %v880, 4294901760
    %v1539 = vsub.f32 %v880, %v1538
    %v1540 = vand.u32 %v1539, 4294901760
    %1541 = vmatpush.msra.mxu0 %v1540
    %v1542 = vand.u32 %v879, 4294901760
    %v1543 = vsub.f32 %v879, %v1542
    %v1544 = vand.u32 %v1543, 4294901760
    %1545 = vmatpush.msra.mxu0 %v1544
    %v1546 = vand.u32 %v878, 4294901760
    %v1547 = vsub.f32 %v878, %v1546
    %v1548 = vand.u32 %v1547, 4294901760
    %1549 = vmatpush.msra.mxu0 %v1548
    %v1550 = vand.u32 %v717, 4294901760
    %1551 = vmatmul.f32.gmra.mxu0 %v1550
    %v1552 = vpop.f32.mrf.mxu0
    %v1553 = vadd.f32 %v1484, %v1552
    %1554 = vdwg.mxu0
    %v1555 = vand.u32 %v893, 4294901760
    %1556 = vmatpush.msra.mxu0 %v1555
    %v1557 = vand.u32 %v892, 4294901760
    %1558 = vmatpush.msra.mxu0 %v1557
    %v1559 = vand.u32 %v891, 4294901760
    %1560 = vmatpush.msra.mxu0 %v1559
    %v1561 = vand.u32 %v890, 4294901760
    %1562 = vmatpush.msra.mxu0 %v1561
    %v1563 = vand.u32 %v889, 4294901760
    %1564 = vmatpush.msra.mxu0 %v1563
    %v1565 = vand.u32 %v888, 4294901760
    %1566 = vmatpush.msra.mxu0 %v1565
    %v1567 = vand.u32 %v887, 4294901760
    %1568 = vmatpush.msra.mxu0 %v1567
    %v1569 = vand.u32 %v886, 4294901760
    %1570 = vmatpush.msra.mxu0 %v1569
    %v1571 = vand.u32 %v885, 4294901760
    %1572 = vmatpush.msra.mxu0 %v1571
    %v1573 = vand.u32 %v884, 4294901760
    %1574 = vmatpush.msra.mxu0 %v1573
    %v1575 = vand.u32 %v883, 4294901760
    %1576 = vmatpush.msra.mxu0 %v1575
    %v1577 = vand.u32 %v882, 4294901760
    %1578 = vmatpush.msra.mxu0 %v1577
    %v1579 = vand.u32 %v881, 4294901760
    %1580 = vmatpush.msra.mxu0 %v1579
    %v1581 = vand.u32 %v880, 4294901760
    %1582 = vmatpush.msra.mxu0 %v1581
    %v1583 = vand.u32 %v879, 4294901760
    %1584 = vmatpush.msra.mxu0 %v1583
    %v1585 = vand.u32 %v878, 4294901760
    %1586 = vmatpush.msra.mxu0 %v1585
    %v1587 = vand.u32 %v717, 4294901760
    %1588 = vmatmul.f32.gmra.mxu0 %v1587
    %v1589 = vpop.f32.mrf.mxu0
    %v1590 = vadd.f32 %v1553, %v1589
    %1591 = vdwg.mxu0
    %v1592 = vld [vmem:[%s5] sm:$0x1]
    %v1594 = vperm.slane %v1592, 0
    %v1596 = vadd.f32 %v1590, %v1594
    %1597 = vst [vmem:[#allocation8] sm:$0xff] %v1596
    // Predicated region
    $region38: #{tpu_custom_call.1} parent=1 // pred_check
      _
    $region39: #{tpu_custom_call.1} parent=1 // pred_check_branch
      %1599 = sbr.rel (0) target = $region41
    $region40: #{tpu_custom_call.1} parent=1 // pred_region
      %1601 = vsyncadd [#allocation4], 0
      %s1603 = sshll.u32 [#allocation8], 4
      %s1604 = int_to_ptr.vmem [resolvable:$true] %s1603
      %s1605 = sshll.u32 %s6, 4
      %s1606 = int_to_ptr.hbm [resolvable:$true] %s1605
      %1608 = dma.vmem_to_hbm [thread:$0]  %s1604, 128, %s1606, [#allocation4]
    $region41: #{tpu_custom_call.1} parent=1 // pred_fallthru
      _
    // Predicated region
    $region42: #{tpu_custom_call.1} parent=1 // pred_check
      _
    $region43: #{tpu_custom_call.1} parent=1 // pred_check_branch
      %1610 = sbr.rel (0) target = $region45
    $region44: #{tpu_custom_call.1} parent=1 // pred_region
      %1612 = dma.done [#allocation4], 128
    $region45: #{tpu_custom_call.1} parent=1 // pred_fallthru
      _
    %1613 = vsyncpa [#allocation3], 1
    %1614 = vsyncpa [#allocation6], 1
    %1615 = vsyncpa [#allocation4], 1

</llo_original>
